<compile_context>
chip_gen: v7x
topology: tpu7x:2x2x1
jax: 0.10.0
libtpu: 0.0.40
codegen_flags: <defaults>
</compile_context>

<pallas_src>
import jax
import jax.numpy as jnp
from jax import lax
from jax.experimental import pallas as pl
from jax.experimental.pallas import tpu as pltpu


def _round_up(n, m):
    return ((n + m - 1) // m) * m


def lstm_recurrence_kernel(gx_ref, whh_ref, out_ref, h_ref, c_ref):
    """One time-chunk of the LSTM recurrence.

    gx_ref:  (t_chunk, B_pad, 4*H_pad) f32  precomputed x@W_ih^T + b, gate order (i,f,o,g)
    whh_ref: (H_pad, 4*H_pad)          bf16 recurrent weights (transposed, gate-block padded)
    out_ref: (t_chunk, B_pad, H_pad)        hidden-state outputs for this chunk
    h_ref, c_ref: (B_pad, H_pad) f32        state carried across grid steps (VMEM scratch)
    """
    tc = pl.program_id(0)

    @pl.when(tc == 0)
    def _():
        h_ref[...] = jnp.zeros_like(h_ref)
        c_ref[...] = jnp.zeros_like(c_ref)

    t_chunk = gx_ref.shape[0]
    h_pad = out_ref.shape[-1]

    whh = whh_ref[...]  # hoisted: resident (bf16) across the whole chunk

    def step(t, carry):
        h, c = carry
        # Only this small recurrent matmul sits on the serial critical path.
        gates = gx_ref[t] + jnp.dot(h.astype(jnp.bfloat16), whh,
                                    preferred_element_type=jnp.float32)
        # (i, f, o) form one contiguous lane-aligned slab; sigmoid via tanh is a
        # single EUP push per vreg: sigmoid(z) = 0.5*(1 + tanh(z/2)).
        sig = 0.5 * jnp.tanh(0.5 * gates[:, :3 * h_pad]) + 0.5
        i_g = sig[:, 0 * h_pad:1 * h_pad]
        f_g = sig[:, 1 * h_pad:2 * h_pad]
        o_g = sig[:, 2 * h_pad:3 * h_pad]
        g_g = jnp.tanh(gates[:, 3 * h_pad:4 * h_pad])
        c_new = f_g * c + i_g * g_g
        h_new = o_g * jnp.tanh(c_new)
        out_ref[t] = h_new.astype(out_ref.dtype)  # (8, 128) lane-dense store
        return (h_new, c_new)

    # Partial unroll: keeps LLO overlap under the MXU/EUP latency of the
    # previous step without blowing vreg live ranges at t_chunk=128.
    h_fin, c_fin = lax.fori_loop(0, t_chunk, step, (h_ref[...], c_ref[...]),
                                 unroll=8)
    h_ref[...] = h_fin
    c_ref[...] = c_fin


def _pack_gates(w, in_dim, in_pad, h, h_pad):
    """PyTorch (4H, in_dim) weight -> (in_pad, 4*h_pad) transposed, gate order (i,f,o,g)."""
    w4 = w.reshape(4, h, in_dim).astype(jnp.float32)   # PyTorch gate order (i, f, g, o)
    w4 = w4[jnp.array([0, 1, 3, 2])]                   # reorder -> (i, f, o, g)
    w4 = jnp.transpose(w4, (2, 0, 1))                  # (in_dim, 4, h)
    w4 = jnp.pad(w4, ((0, in_pad - in_dim), (0, 0), (0, h_pad - h)))
    return w4.reshape(in_pad, 4 * h_pad)


def _pack_bias(b_ih, b_hh, h, h_pad):
    b = (b_ih + b_hh).astype(jnp.float32).reshape(4, h)
    b = b[jnp.array([0, 1, 3, 2])]                     # (i, f, o, g)
    b = jnp.pad(b, ((0, 0), (0, h_pad - h)))
    return b.reshape(1, 4 * h_pad)


def bilstm_forward(x, w_ih, w_hh, b_ih, b_hh, *, t_chunk=128):
    """x: (B, T, F) batch_first, like the PyTorch module. Returns (B, T, H)."""
    B, T, F = x.shape
    H = w_hh.shape[1]

    B_pad = _round_up(B, 8)
    H_pad = _round_up(H, 128)
    t_chunk = min(t_chunk, _round_up(T, 8))            # don't over-chunk short sequences
    T_pad = _round_up(T, t_chunk)
    n_chunks = T_pad // t_chunk

    # ---- parameter layout plumbing (plain XLA, outside the kernel) ----
    wih_p = _pack_gates(w_ih, F, F, H, H_pad)                          # (F, 4*H_pad) f32
    whh_p = _pack_gates(w_hh, H, H_pad, H, H_pad).astype(jnp.bfloat16)  # (H_pad, 4*H_pad) bf16
    b_p = _pack_bias(b_ih, b_hh, H, H_pad)                              # (1, 4*H_pad) f32

    # ---- input projection hoisted to ONE big XLA matmul (bf16 in, f32 acc) ----
    gx = jnp.dot(x.reshape(B * T, F).astype(jnp.bfloat16),
                 wih_p.astype(jnp.bfloat16),
                 preferred_element_type=jnp.float32) + b_p              # (B*T, 4*H_pad)
    gx = jnp.transpose(gx.reshape(B, T, 4 * H_pad), (1, 0, 2))          # (T, B, 4*H_pad)
    gx = jnp.pad(gx, ((0, T_pad - T), (0, B_pad - B), (0, 0)))          # zero pads -> inert lanes

    # TODO(synk): at production H on v7x, add pipeline_mode=pl.Buffered(1) to the
    # whh BlockSpec so the constant weight block isn't double-buffered in 64 MiB VMEM.
    # TODO(synk): if the layer ever becomes bidirectional (or B grows), shard the
    # second direction / batch half onto the second TensorCore on v7x.
    out_tm = pl.pallas_call(
        lstm_recurrence_kernel,
        out_shape=jax.ShapeDtypeStruct((T_pad, B_pad, H_pad), x.dtype),
        grid_spec=pltpu.PrefetchScalarGridSpec(
            num_scalar_prefetch=0,
            grid=(n_chunks,),
            in_specs=[
                pl.BlockSpec((t_chunk, B_pad, 4 * H_pad), lambda t: (t, 0, 0)),
                pl.BlockSpec((H_pad, 4 * H_pad), lambda t: (0, 0)),
            ],
            out_specs=pl.BlockSpec((t_chunk, B_pad, H_pad), lambda t: (t, 0, 0)),
            scratch_shapes=[
                pltpu.VMEM((B_pad, H_pad), jnp.float32),   # h carry
                pltpu.VMEM((B_pad, H_pad), jnp.float32),   # c carry
            ],
        ),
        compiler_params=pltpu.CompilerParams(
            dimension_semantics=("arbitrary",),            # time chunks are strictly serial
            vmem_limit_bytes=32 * 1024 * 1024,             # a few MiB actually used; fits v7x
        ),
    )(gx, whh_p)

    # TODO(synk): emit (B, T, H) directly from the kernel (needs an in-kernel chunk
    # transpose to keep per-step stores lane-dense); time-major + wrapper transpose for now.
    return jnp.transpose(out_tm[:T, :B, :H], (1, 0, 2))                # (B, T, H)


def lstm_reference(x, w_ih, w_hh, b_ih, b_hh):
    """Pure-JAX f32 reference (lax.scan) replicating torch.nn.LSTM forward."""
    B, T, F = x.shape
    H = w_hh.shape[1]
    b = b_ih + b_hh

    def step(carry, x_t):
        h, c = carry
        gates = x_t @ w_ih.T + h @ w_hh.T + b
        i_g = jax.nn.sigmoid(gates[:, 0 * H:1 * H])
        f_g = jax.nn.sigmoid(gates[:, 1 * H:2 * H])
        g_g = jnp.tanh(gates[:, 2 * H:3 * H])
        o_g = jax.nn.sigmoid(gates[:, 3 * H:4 * H])
        c_new = f_g * c + i_g * g_g
        h_new = o_g * jnp.tanh(c_new)
        return (h_new, c_new), h_new

    h0 = jnp.zeros((B, H), jnp.float32)
    c0 = jnp.zeros((B, H), jnp.float32)
    _, ys = lax.scan(step, (h0, c0), jnp.transpose(x, (1, 0, 2)))
    return jnp.transpose(ys, (1, 0, 2))


if __name__ == "__main__":
    B, T, F, H = 2, 8, 16, 32  # batch, seq, input_features, recurrent_features

    key = jax.random.PRNGKey(0)
    k_x, k_wih, k_whh, k_bih, k_bhh, k_x2 = jax.random.split(key, 6)

    # Deterministic synthetic parameters (PyTorch-style uniform(-1/sqrt(H), 1/sqrt(H))).
    scale = 1.0 / jnp.sqrt(jnp.float32(H))
    x = jax.random.normal(k_x, (B, T, F), jnp.float32)
    w_ih = jax.random.uniform(k_wih, (4 * H, F), jnp.float32, -scale, scale)
    w_hh = jax.random.uniform(k_whh, (4 * H, H), jnp.float32, -scale, scale)
    b_ih = jax.random.uniform(k_bih, (4 * H,), jnp.float32, -scale, scale)
    b_hh = jax.random.uniform(k_bhh, (4 * H,), jnp.float32, -scale, scale)

    # Single-chunk path.
    y = bilstm_forward(x, w_ih, w_hh, b_ih, b_hh)
    jax.block_until_ready(y)
    y_ref = lstm_reference(x, w_ih, w_hh, b_ih, b_hh)
    assert y.shape == (B, T, H)
    # Tolerance reflects bf16 matmul operands with f32 accumulation.
    assert jnp.max(jnp.abs(y - y_ref)) < 3e-2, "mismatch vs reference (single chunk)"

    # Multi-chunk path: (h, c) carried across grid steps + trailing T padding.
    T2 = 40
    x2 = jax.random.normal(k_x2, (B, T2, F), jnp.float32)
    y2 = bilstm_forward(x2, w_ih, w_hh, b_ih, b_hh, t_chunk=16)
    jax.block_until_ready(y2)
    y2_ref = lstm_reference(x2, w_ih, w_hh, b_ih, b_hh)
    assert y2.shape == (B, T2, H)
    assert jnp.max(jnp.abs(y2 - y2_ref)) < 3e-2, "mismatch vs reference (multi chunk)"

    print("KERNEL_OK")
</pallas_src>

<mosaic_0001>
module attributes {stable_mosaic.version = 11 : i64} {
  func.func @lstm_recurrence_kernel(%arg0: i32, %arg1: memref<8x8x512xf32, #tpu.memory_space<vmem>>, %arg2: memref<128x512xbf16, #tpu.memory_space<vmem>>, %arg3: memref<8x8x128xf32, #tpu.memory_space<vmem>>, %arg4: memref<8x128xf32, #tpu.memory_space<vmem>>, %arg5: memref<8x128xf32, #tpu.memory_space<vmem>>) attributes {dimension_semantics = [#tpu.dimension_semantics<arbitrary>], iteration_bounds = array<i64: 1>, scalar_prefetch = 0 : i64, scratch_operands = 2 : i64, tpu.core_type = #tpu.core_type<tc>, window_params = [{transform_indices = @transform_0, window_bounds = array<i64: 8, 8, 512>}, {pipeline_mode = #tpu.pipeline_mode<synchronous>, transform_indices = @transform_1, window_bounds = array<i64: 128, 512>}, {transform_indices = @transform_2, window_bounds = array<i64: 8, 8, 128>}]} {
    %c0_i32 = arith.constant 0 : i32
    %0 = arith.cmpi eq, %arg0, %c0_i32 : i32
    %1 = arith.extui %0 : i1 to i32
    %c0_i32_0 = arith.constant 0 : i32
    %2 = arith.cmpi ne, %1, %c0_i32_0 : i32
    scf.if %2 {
      %cst_74 = arith.constant 0.000000e+00 : f32
      %232 = vector.broadcast %cst_74 : f32 to vector<8x128xf32>
      %c0_75 = arith.constant 0 : index
      %c0_76 = arith.constant 0 : index
      %233 = vector.load %arg4[%c0_75, %c0_76] : memref<8x128xf32, #tpu.memory_space<vmem>>, vector<8x128xf32>
      tpu.vector_store %arg4[%c0_75, %c0_76], %232 {strides = array<i32>} : memref<8x128xf32, #tpu.memory_space<vmem>>, vector<8x128xf32>,
      %cst_77 = arith.constant 0.000000e+00 : f32
      %234 = vector.broadcast %cst_77 : f32 to vector<8x128xf32>
      %c0_78 = arith.constant 0 : index
      %c0_79 = arith.constant 0 : index
      %235 = vector.load %arg5[%c0_78, %c0_79] : memref<8x128xf32, #tpu.memory_space<vmem>>, vector<8x128xf32>
      tpu.vector_store %arg5[%c0_78, %c0_79], %234 {strides = array<i32>} : memref<8x128xf32, #tpu.memory_space<vmem>>, vector<8x128xf32>,
    } else {
    }
    %c0 = arith.constant 0 : index
    %c0_1 = arith.constant 0 : index
    %3 = vector.load %arg2[%c0, %c0_1] : memref<128x512xbf16, #tpu.memory_space<vmem>>, vector<128x512xbf16>
    %c0_2 = arith.constant 0 : index
    %c0_3 = arith.constant 0 : index
    %4 = vector.load %arg4[%c0_2, %c0_3] : memref<8x128xf32, #tpu.memory_space<vmem>>, vector<8x128xf32>
    %c0_4 = arith.constant 0 : index
    %c0_5 = arith.constant 0 : index
    %5 = vector.load %arg5[%c0_4, %c0_5] : memref<8x128xf32, #tpu.memory_space<vmem>>, vector<8x128xf32>
    %c0_i32_6 = arith.constant 0 : i32
    %6 = arith.index_cast %c0_i32_6 : i32 to index
    %c0_7 = arith.constant 0 : index
    %c0_8 = arith.constant 0 : index
    %7 = vector.load %arg1[%6, %c0_7, %c0_8] : memref<8x8x512xf32, #tpu.memory_space<vmem>>, vector<1x8x512xf32>
    %8 = vector.shape_cast %7 : vector<1x8x512xf32> to vector<8x512xf32>
    %9 = arith.truncf %4 : vector<8x128xf32> to vector<8x128xbf16>
    %cst = arith.constant dense<0.000000e+00> : vector<8x512xf32>
    %10 = tpu.matmul %9, %3, %cst {dimension_numbers = #tpu.dot_dimension_numbers<[1], [0], [0], [1], [0, 0, 1, 1], [], []>} : vector<8x128xbf16>, vector<128x512xbf16>, vector<8x512xf32> -> vector<8x512xf32>
    %11 = arith.addf %8, %10 : vector<8x512xf32>
    %12 = vector.extract_strided_slice %11 {offsets = [0, 0], sizes = [8, 384], strides = [1, 1]} : vector<8x512xf32> to vector<8x384xf32>
    %cst_9 = arith.constant 5.000000e-01 : f32
    %13 = vector.broadcast %cst_9 : f32 to vector<8x384xf32>
    %14 = arith.mulf %13, %12 : vector<8x384xf32>
    %15 = math.tanh %14 : vector<8x384xf32>
    %cst_10 = arith.constant 5.000000e-01 : f32
    %16 = vector.broadcast %cst_10 : f32 to vector<8x384xf32>
    %17 = arith.mulf %16, %15 : vector<8x384xf32>
    %cst_11 = arith.constant 5.000000e-01 : f32
    %18 = vector.broadcast %cst_11 : f32 to vector<8x384xf32>
    %19 = arith.addf %17, %18 : vector<8x384xf32>
    %20 = vector.extract_strided_slice %19 {offsets = [0, 0], sizes = [8, 128], strides = [1, 1]} : vector<8x384xf32> to vector<8x128xf32>
    %21 = vector.extract_strided_slice %19 {offsets = [0, 128], sizes = [8, 128], strides = [1, 1]} : vector<8x384xf32> to vector<8x128xf32>
    %22 = vector.extract_strided_slice %19 {offsets = [0, 256], sizes = [8, 128], strides = [1, 1]} : vector<8x384xf32> to vector<8x128xf32>
    %23 = vector.extract_strided_slice %11 {offsets = [0, 384], sizes = [8, 128], strides = [1, 1]} : vector<8x512xf32> to vector<8x128xf32>
    %24 = math.tanh %23 : vector<8x128xf32>
    %25 = arith.mulf %21, %5 : vector<8x128xf32>
    %26 = arith.mulf %20, %24 : vector<8x128xf32>
    %27 = arith.addf %25, %26 : vector<8x128xf32>
    %28 = math.tanh %27 : vector<8x128xf32>
    %29 = arith.mulf %22, %28 : vector<8x128xf32>
    %30 = arith.index_cast %c0_i32_6 : i32 to index
    %c0_12 = arith.constant 0 : index
    %c0_13 = arith.constant 0 : index
    %31 = vector.load %arg3[%30, %c0_12, %c0_13] : memref<8x8x128xf32, #tpu.memory_space<vmem>>, vector<1x8x128xf32>
    %32 = vector.shape_cast %31 : vector<1x8x128xf32> to vector<8x128xf32>
    %33 = vector.shape_cast %29 : vector<8x128xf32> to vector<1x8x128xf32>
    tpu.vector_store %arg3[%30, %c0_12, %c0_13], %33 {strides = array<i32>} : memref<8x8x128xf32, #tpu.memory_space<vmem>>, vector<1x8x128xf32>,
    %c1_i32 = arith.constant 1 : i32
    %34 = arith.index_cast %c1_i32 : i32 to index
    %c0_14 = arith.constant 0 : index
    %c0_15 = arith.constant 0 : index
    %35 = vector.load %arg1[%34, %c0_14, %c0_15] : memref<8x8x512xf32, #tpu.memory_space<vmem>>, vector<1x8x512xf32>
    %36 = vector.shape_cast %35 : vector<1x8x512xf32> to vector<8x512xf32>
    %37 = arith.truncf %29 : vector<8x128xf32> to vector<8x128xbf16>
    %cst_16 = arith.constant dense<0.000000e+00> : vector<8x512xf32>
    %38 = tpu.matmul %37, %3, %cst_16 {dimension_numbers = #tpu.dot_dimension_numbers<[1], [0], [0], [1], [0, 0, 1, 1], [], []>} : vector<8x128xbf16>, vector<128x512xbf16>, vector<8x512xf32> -> vector<8x512xf32>
    %39 = arith.addf %36, %38 : vector<8x512xf32>
    %40 = vector.extract_strided_slice %39 {offsets = [0, 0], sizes = [8, 384], strides = [1, 1]} : vector<8x512xf32> to vector<8x384xf32>
    %cst_17 = arith.constant 5.000000e-01 : f32
    %41 = vector.broadcast %cst_17 : f32 to vector<8x384xf32>
    %42 = arith.mulf %41, %40 : vector<8x384xf32>
    %43 = math.tanh %42 : vector<8x384xf32>
    %cst_18 = arith.constant 5.000000e-01 : f32
    %44 = vector.broadcast %cst_18 : f32 to vector<8x384xf32>
    %45 = arith.mulf %44, %43 : vector<8x384xf32>
    %cst_19 = arith.constant 5.000000e-01 : f32
    %46 = vector.broadcast %cst_19 : f32 to vector<8x384xf32>
    %47 = arith.addf %45, %46 : vector<8x384xf32>
    %48 = vector.extract_strided_slice %47 {offsets = [0, 0], sizes = [8, 128], strides = [1, 1]} : vector<8x384xf32> to vector<8x128xf32>
    %49 = vector.extract_strided_slice %47 {offsets = [0, 128], sizes = [8, 128], strides = [1, 1]} : vector<8x384xf32> to vector<8x128xf32>
    %50 = vector.extract_strided_slice %47 {offsets = [0, 256], sizes = [8, 128], strides = [1, 1]} : vector<8x384xf32> to vector<8x128xf32>
    %51 = vector.extract_strided_slice %39 {offsets = [0, 384], sizes = [8, 128], strides = [1, 1]} : vector<8x512xf32> to vector<8x128xf32>
    %52 = math.tanh %51 : vector<8x128xf32>
    %53 = arith.mulf %49, %27 : vector<8x128xf32>
    %54 = arith.mulf %48, %52 : vector<8x128xf32>
    %55 = arith.addf %53, %54 : vector<8x128xf32>
    %56 = math.tanh %55 : vector<8x128xf32>
    %57 = arith.mulf %50, %56 : vector<8x128xf32>
    %58 = arith.index_cast %c1_i32 : i32 to index
    %c0_20 = arith.constant 0 : index
    %c0_21 = arith.constant 0 : index
    %59 = vector.load %arg3[%58, %c0_20, %c0_21] : memref<8x8x128xf32, #tpu.memory_space<vmem>>, vector<1x8x128xf32>
    %60 = vector.shape_cast %59 : vector<1x8x128xf32> to vector<8x128xf32>
    %61 = vector.shape_cast %57 : vector<8x128xf32> to vector<1x8x128xf32>
    tpu.vector_store %arg3[%58, %c0_20, %c0_21], %61 {strides = array<i32>} : memref<8x8x128xf32, #tpu.memory_space<vmem>>, vector<1x8x128xf32>,
    %c2_i32 = arith.constant 2 : i32
    %62 = arith.index_cast %c2_i32 : i32 to index
    %c0_22 = arith.constant 0 : index
    %c0_23 = arith.constant 0 : index
    %63 = vector.load %arg1[%62, %c0_22, %c0_23] : memref<8x8x512xf32, #tpu.memory_space<vmem>>, vector<1x8x512xf32>
    %64 = vector.shape_cast %63 : vector<1x8x512xf32> to vector<8x512xf32>
    %65 = arith.truncf %57 : vector<8x128xf32> to vector<8x128xbf16>
    %cst_24 = arith.constant dense<0.000000e+00> : vector<8x512xf32>
    %66 = tpu.matmul %65, %3, %cst_24 {dimension_numbers = #tpu.dot_dimension_numbers<[1], [0], [0], [1], [0, 0, 1, 1], [], []>} : vector<8x128xbf16>, vector<128x512xbf16>, vector<8x512xf32> -> vector<8x512xf32>
    %67 = arith.addf %64, %66 : vector<8x512xf32>
    %68 = vector.extract_strided_slice %67 {offsets = [0, 0], sizes = [8, 384], strides = [1, 1]} : vector<8x512xf32> to vector<8x384xf32>
    %cst_25 = arith.constant 5.000000e-01 : f32
    %69 = vector.broadcast %cst_25 : f32 to vector<8x384xf32>
    %70 = arith.mulf %69, %68 : vector<8x384xf32>
    %71 = math.tanh %70 : vector<8x384xf32>
    %cst_26 = arith.constant 5.000000e-01 : f32
    %72 = vector.broadcast %cst_26 : f32 to vector<8x384xf32>
    %73 = arith.mulf %72, %71 : vector<8x384xf32>
    %cst_27 = arith.constant 5.000000e-01 : f32
    %74 = vector.broadcast %cst_27 : f32 to vector<8x384xf32>
    %75 = arith.addf %73, %74 : vector<8x384xf32>
    %76 = vector.extract_strided_slice %75 {offsets = [0, 0], sizes = [8, 128], strides = [1, 1]} : vector<8x384xf32> to vector<8x128xf32>
    %77 = vector.extract_strided_slice %75 {offsets = [0, 128], sizes = [8, 128], strides = [1, 1]} : vector<8x384xf32> to vector<8x128xf32>
    %78 = vector.extract_strided_slice %75 {offsets = [0, 256], sizes = [8, 128], strides = [1, 1]} : vector<8x384xf32> to vector<8x128xf32>
    %79 = vector.extract_strided_slice %67 {offsets = [0, 384], sizes = [8, 128], strides = [1, 1]} : vector<8x512xf32> to vector<8x128xf32>
    %80 = math.tanh %79 : vector<8x128xf32>
    %81 = arith.mulf %77, %55 : vector<8x128xf32>
    %82 = arith.mulf %76, %80 : vector<8x128xf32>
    %83 = arith.addf %81, %82 : vector<8x128xf32>
    %84 = math.tanh %83 : vector<8x128xf32>
    %85 = arith.mulf %78, %84 : vector<8x128xf32>
    %86 = arith.index_cast %c2_i32 : i32 to index
    %c0_28 = arith.constant 0 : index
    %c0_29 = arith.constant 0 : index
    %87 = vector.load %arg3[%86, %c0_28, %c0_29] : memref<8x8x128xf32, #tpu.memory_space<vmem>>, vector<1x8x128xf32>
    %88 = vector.shape_cast %87 : vector<1x8x128xf32> to vector<8x128xf32>
    %89 = vector.shape_cast %85 : vector<8x128xf32> to vector<1x8x128xf32>
    tpu.vector_store %arg3[%86, %c0_28, %c0_29], %89 {strides = array<i32>} : memref<8x8x128xf32, #tpu.memory_space<vmem>>, vector<1x8x128xf32>,
    %c3_i32 = arith.constant 3 : i32
    %90 = arith.index_cast %c3_i32 : i32 to index
    %c0_30 = arith.constant 0 : index
    %c0_31 = arith.constant 0 : index
    %91 = vector.load %arg1[%90, %c0_30, %c0_31] : memref<8x8x512xf32, #tpu.memory_space<vmem>>, vector<1x8x512xf32>
    %92 = vector.shape_cast %91 : vector<1x8x512xf32> to vector<8x512xf32>
    %93 = arith.truncf %85 : vector<8x128xf32> to vector<8x128xbf16>
    %cst_32 = arith.constant dense<0.000000e+00> : vector<8x512xf32>
    %94 = tpu.matmul %93, %3, %cst_32 {dimension_numbers = #tpu.dot_dimension_numbers<[1], [0], [0], [1], [0, 0, 1, 1], [], []>} : vector<8x128xbf16>, vector<128x512xbf16>, vector<8x512xf32> -> vector<8x512xf32>
    %95 = arith.addf %92, %94 : vector<8x512xf32>
    %96 = vector.extract_strided_slice %95 {offsets = [0, 0], sizes = [8, 384], strides = [1, 1]} : vector<8x512xf32> to vector<8x384xf32>
    %cst_33 = arith.constant 5.000000e-01 : f32
    %97 = vector.broadcast %cst_33 : f32 to vector<8x384xf32>
    %98 = arith.mulf %97, %96 : vector<8x384xf32>
    %99 = math.tanh %98 : vector<8x384xf32>
    %cst_34 = arith.constant 5.000000e-01 : f32
    %100 = vector.broadcast %cst_34 : f32 to vector<8x384xf32>
    %101 = arith.mulf %100, %99 : vector<8x384xf32>
    %cst_35 = arith.constant 5.000000e-01 : f32
    %102 = vector.broadcast %cst_35 : f32 to vector<8x384xf32>
    %103 = arith.addf %101, %102 : vector<8x384xf32>
    %104 = vector.extract_strided_slice %103 {offsets = [0, 0], sizes = [8, 128], strides = [1, 1]} : vector<8x384xf32> to vector<8x128xf32>
    %105 = vector.extract_strided_slice %103 {offsets = [0, 128], sizes = [8, 128], strides = [1, 1]} : vector<8x384xf32> to vector<8x128xf32>
    %106 = vector.extract_strided_slice %103 {offsets = [0, 256], sizes = [8, 128], strides = [1, 1]} : vector<8x384xf32> to vector<8x128xf32>
    %107 = vector.extract_strided_slice %95 {offsets = [0, 384], sizes = [8, 128], strides = [1, 1]} : vector<8x512xf32> to vector<8x128xf32>
    %108 = math.tanh %107 : vector<8x128xf32>
    %109 = arith.mulf %105, %83 : vector<8x128xf32>
    %110 = arith.mulf %104, %108 : vector<8x128xf32>
    %111 = arith.addf %109, %110 : vector<8x128xf32>
    %112 = math.tanh %111 : vector<8x128xf32>
    %113 = arith.mulf %106, %112 : vector<8x128xf32>
    %114 = arith.index_cast %c3_i32 : i32 to index
    %c0_36 = arith.constant 0 : index
    %c0_37 = arith.constant 0 : index
    %115 = vector.load %arg3[%114, %c0_36, %c0_37] : memref<8x8x128xf32, #tpu.memory_space<vmem>>, vector<1x8x128xf32>
    %116 = vector.shape_cast %115 : vector<1x8x128xf32> to vector<8x128xf32>
    %117 = vector.shape_cast %113 : vector<8x128xf32> to vector<1x8x128xf32>
    tpu.vector_store %arg3[%114, %c0_36, %c0_37], %117 {strides = array<i32>} : memref<8x8x128xf32, #tpu.memory_space<vmem>>, vector<1x8x128xf32>,
    %c4_i32 = arith.constant 4 : i32
    %118 = arith.index_cast %c4_i32 : i32 to index
    %c0_38 = arith.constant 0 : index
    %c0_39 = arith.constant 0 : index
    %119 = vector.load %arg1[%118, %c0_38, %c0_39] : memref<8x8x512xf32, #tpu.memory_space<vmem>>, vector<1x8x512xf32>
    %120 = vector.shape_cast %119 : vector<1x8x512xf32> to vector<8x512xf32>
    %121 = arith.truncf %113 : vector<8x128xf32> to vector<8x128xbf16>
    %cst_40 = arith.constant dense<0.000000e+00> : vector<8x512xf32>
    %122 = tpu.matmul %121, %3, %cst_40 {dimension_numbers = #tpu.dot_dimension_numbers<[1], [0], [0], [1], [0, 0, 1, 1], [], []>} : vector<8x128xbf16>, vector<128x512xbf16>, vector<8x512xf32> -> vector<8x512xf32>
    %123 = arith.addf %120, %122 : vector<8x512xf32>
    %124 = vector.extract_strided_slice %123 {offsets = [0, 0], sizes = [8, 384], strides = [1, 1]} : vector<8x512xf32> to vector<8x384xf32>
    %cst_41 = arith.constant 5.000000e-01 : f32
    %125 = vector.broadcast %cst_41 : f32 to vector<8x384xf32>
    %126 = arith.mulf %125, %124 : vector<8x384xf32>
    %127 = math.tanh %126 : vector<8x384xf32>
    %cst_42 = arith.constant 5.000000e-01 : f32
    %128 = vector.broadcast %cst_42 : f32 to vector<8x384xf32>
    %129 = arith.mulf %128, %127 : vector<8x384xf32>
    %cst_43 = arith.constant 5.000000e-01 : f32
    %130 = vector.broadcast %cst_43 : f32 to vector<8x384xf32>
    %131 = arith.addf %129, %130 : vector<8x384xf32>
    %132 = vector.extract_strided_slice %131 {offsets = [0, 0], sizes = [8, 128], strides = [1, 1]} : vector<8x384xf32> to vector<8x128xf32>
    %133 = vector.extract_strided_slice %131 {offsets = [0, 128], sizes = [8, 128], strides = [1, 1]} : vector<8x384xf32> to vector<8x128xf32>
    %134 = vector.extract_strided_slice %131 {offsets = [0, 256], sizes = [8, 128], strides = [1, 1]} : vector<8x384xf32> to vector<8x128xf32>
    %135 = vector.extract_strided_slice %123 {offsets = [0, 384], sizes = [8, 128], strides = [1, 1]} : vector<8x512xf32> to vector<8x128xf32>
    %136 = math.tanh %135 : vector<8x128xf32>
    %137 = arith.mulf %133, %111 : vector<8x128xf32>
    %138 = arith.mulf %132, %136 : vector<8x128xf32>
    %139 = arith.addf %137, %138 : vector<8x128xf32>
    %140 = math.tanh %139 : vector<8x128xf32>
    %141 = arith.mulf %134, %140 : vector<8x128xf32>
    %142 = arith.index_cast %c4_i32 : i32 to index
    %c0_44 = arith.constant 0 : index
    %c0_45 = arith.constant 0 : index
    %143 = vector.load %arg3[%142, %c0_44, %c0_45] : memref<8x8x128xf32, #tpu.memory_space<vmem>>, vector<1x8x128xf32>
    %144 = vector.shape_cast %143 : vector<1x8x128xf32> to vector<8x128xf32>
    %145 = vector.shape_cast %141 : vector<8x128xf32> to vector<1x8x128xf32>
    tpu.vector_store %arg3[%142, %c0_44, %c0_45], %145 {strides = array<i32>} : memref<8x8x128xf32, #tpu.memory_space<vmem>>, vector<1x8x128xf32>,
    %c5_i32 = arith.constant 5 : i32
    %146 = arith.index_cast %c5_i32 : i32 to index
    %c0_46 = arith.constant 0 : index
    %c0_47 = arith.constant 0 : index
    %147 = vector.load %arg1[%146, %c0_46, %c0_47] : memref<8x8x512xf32, #tpu.memory_space<vmem>>, vector<1x8x512xf32>
    %148 = vector.shape_cast %147 : vector<1x8x512xf32> to vector<8x512xf32>
    %149 = arith.truncf %141 : vector<8x128xf32> to vector<8x128xbf16>
    %cst_48 = arith.constant dense<0.000000e+00> : vector<8x512xf32>
    %150 = tpu.matmul %149, %3, %cst_48 {dimension_numbers = #tpu.dot_dimension_numbers<[1], [0], [0], [1], [0, 0, 1, 1], [], []>} : vector<8x128xbf16>, vector<128x512xbf16>, vector<8x512xf32> -> vector<8x512xf32>
    %151 = arith.addf %148, %150 : vector<8x512xf32>
    %152 = vector.extract_strided_slice %151 {offsets = [0, 0], sizes = [8, 384], strides = [1, 1]} : vector<8x512xf32> to vector<8x384xf32>
    %cst_49 = arith.constant 5.000000e-01 : f32
    %153 = vector.broadcast %cst_49 : f32 to vector<8x384xf32>
    %154 = arith.mulf %153, %152 : vector<8x384xf32>
    %155 = math.tanh %154 : vector<8x384xf32>
    %cst_50 = arith.constant 5.000000e-01 : f32
    %156 = vector.broadcast %cst_50 : f32 to vector<8x384xf32>
    %157 = arith.mulf %156, %155 : vector<8x384xf32>
    %cst_51 = arith.constant 5.000000e-01 : f32
    %158 = vector.broadcast %cst_51 : f32 to vector<8x384xf32>
    %159 = arith.addf %157, %158 : vector<8x384xf32>
    %160 = vector.extract_strided_slice %159 {offsets = [0, 0], sizes = [8, 128], strides = [1, 1]} : vector<8x384xf32> to vector<8x128xf32>
    %161 = vector.extract_strided_slice %159 {offsets = [0, 128], sizes = [8, 128], strides = [1, 1]} : vector<8x384xf32> to vector<8x128xf32>
    %162 = vector.extract_strided_slice %159 {offsets = [0, 256], sizes = [8, 128], strides = [1, 1]} : vector<8x384xf32> to vector<8x128xf32>
    %163 = vector.extract_strided_slice %151 {offsets = [0, 384], sizes = [8, 128], strides = [1, 1]} : vector<8x512xf32> to vector<8x128xf32>
    %164 = math.tanh %163 : vector<8x128xf32>
    %165 = arith.mulf %161, %139 : vector<8x128xf32>
    %166 = arith.mulf %160, %164 : vector<8x128xf32>
    %167 = arith.addf %165, %166 : vector<8x128xf32>
    %168 = math.tanh %167 : vector<8x128xf32>
    %169 = arith.mulf %162, %168 : vector<8x128xf32>
    %170 = arith.index_cast %c5_i32 : i32 to index
    %c0_52 = arith.constant 0 : index
    %c0_53 = arith.constant 0 : index
    %171 = vector.load %arg3[%170, %c0_52, %c0_53] : memref<8x8x128xf32, #tpu.memory_space<vmem>>, vector<1x8x128xf32>
    %172 = vector.shape_cast %171 : vector<1x8x128xf32> to vector<8x128xf32>
    %173 = vector.shape_cast %169 : vector<8x128xf32> to vector<1x8x128xf32>
    tpu.vector_store %arg3[%170, %c0_52, %c0_53], %173 {strides = array<i32>} : memref<8x8x128xf32, #tpu.memory_space<vmem>>, vector<1x8x128xf32>,
    %c6_i32 = arith.constant 6 : i32
    %174 = arith.index_cast %c6_i32 : i32 to index
    %c0_54 = arith.constant 0 : index
    %c0_55 = arith.constant 0 : index
    %175 = vector.load %arg1[%174, %c0_54, %c0_55] : memref<8x8x512xf32, #tpu.memory_space<vmem>>, vector<1x8x512xf32>
    %176 = vector.shape_cast %175 : vector<1x8x512xf32> to vector<8x512xf32>
    %177 = arith.truncf %169 : vector<8x128xf32> to vector<8x128xbf16>
    %cst_56 = arith.constant dense<0.000000e+00> : vector<8x512xf32>
    %178 = tpu.matmul %177, %3, %cst_56 {dimension_numbers = #tpu.dot_dimension_numbers<[1], [0], [0], [1], [0, 0, 1, 1], [], []>} : vector<8x128xbf16>, vector<128x512xbf16>, vector<8x512xf32> -> vector<8x512xf32>
    %179 = arith.addf %176, %178 : vector<8x512xf32>
    %180 = vector.extract_strided_slice %179 {offsets = [0, 0], sizes = [8, 384], strides = [1, 1]} : vector<8x512xf32> to vector<8x384xf32>
    %cst_57 = arith.constant 5.000000e-01 : f32
    %181 = vector.broadcast %cst_57 : f32 to vector<8x384xf32>
    %182 = arith.mulf %181, %180 : vector<8x384xf32>
    %183 = math.tanh %182 : vector<8x384xf32>
    %cst_58 = arith.constant 5.000000e-01 : f32
    %184 = vector.broadcast %cst_58 : f32 to vector<8x384xf32>
    %185 = arith.mulf %184, %183 : vector<8x384xf32>
    %cst_59 = arith.constant 5.000000e-01 : f32
    %186 = vector.broadcast %cst_59 : f32 to vector<8x384xf32>
    %187 = arith.addf %185, %186 : vector<8x384xf32>
    %188 = vector.extract_strided_slice %187 {offsets = [0, 0], sizes = [8, 128], strides = [1, 1]} : vector<8x384xf32> to vector<8x128xf32>
    %189 = vector.extract_strided_slice %187 {offsets = [0, 128], sizes = [8, 128], strides = [1, 1]} : vector<8x384xf32> to vector<8x128xf32>
    %190 = vector.extract_strided_slice %187 {offsets = [0, 256], sizes = [8, 128], strides = [1, 1]} : vector<8x384xf32> to vector<8x128xf32>
    %191 = vector.extract_strided_slice %179 {offsets = [0, 384], sizes = [8, 128], strides = [1, 1]} : vector<8x512xf32> to vector<8x128xf32>
    %192 = math.tanh %191 : vector<8x128xf32>
    %193 = arith.mulf %189, %167 : vector<8x128xf32>
    %194 = arith.mulf %188, %192 : vector<8x128xf32>
    %195 = arith.addf %193, %194 : vector<8x128xf32>
    %196 = math.tanh %195 : vector<8x128xf32>
    %197 = arith.mulf %190, %196 : vector<8x128xf32>
    %198 = arith.index_cast %c6_i32 : i32 to index
    %c0_60 = arith.constant 0 : index
    %c0_61 = arith.constant 0 : index
    %199 = vector.load %arg3[%198, %c0_60, %c0_61] : memref<8x8x128xf32, #tpu.memory_space<vmem>>, vector<1x8x128xf32>
    %200 = vector.shape_cast %199 : vector<1x8x128xf32> to vector<8x128xf32>
    %201 = vector.shape_cast %197 : vector<8x128xf32> to vector<1x8x128xf32>
    tpu.vector_store %arg3[%198, %c0_60, %c0_61], %201 {strides = array<i32>} : memref<8x8x128xf32, #tpu.memory_space<vmem>>, vector<1x8x128xf32>,
    %c7_i32 = arith.constant 7 : i32
    %202 = arith.index_cast %c7_i32 : i32 to index
    %c0_62 = arith.constant 0 : index
    %c0_63 = arith.constant 0 : index
    %203 = vector.load %arg1[%202, %c0_62, %c0_63] : memref<8x8x512xf32, #tpu.memory_space<vmem>>, vector<1x8x512xf32>
    %204 = vector.shape_cast %203 : vector<1x8x512xf32> to vector<8x512xf32>
    %205 = arith.truncf %197 : vector<8x128xf32> to vector<8x128xbf16>
    %cst_64 = arith.constant dense<0.000000e+00> : vector<8x512xf32>
    %206 = tpu.matmul %205, %3, %cst_64 {dimension_numbers = #tpu.dot_dimension_numbers<[1], [0], [0], [1], [0, 0, 1, 1], [], []>} : vector<8x128xbf16>, vector<128x512xbf16>, vector<8x512xf32> -> vector<8x512xf32>
    %207 = arith.addf %204, %206 : vector<8x512xf32>
    %208 = vector.extract_strided_slice %207 {offsets = [0, 0], sizes = [8, 384], strides = [1, 1]} : vector<8x512xf32> to vector<8x384xf32>
    %cst_65 = arith.constant 5.000000e-01 : f32
    %209 = vector.broadcast %cst_65 : f32 to vector<8x384xf32>
    %210 = arith.mulf %209, %208 : vector<8x384xf32>
    %211 = math.tanh %210 : vector<8x384xf32>
    %cst_66 = arith.constant 5.000000e-01 : f32
    %212 = vector.broadcast %cst_66 : f32 to vector<8x384xf32>
    %213 = arith.mulf %212, %211 : vector<8x384xf32>
    %cst_67 = arith.constant 5.000000e-01 : f32
    %214 = vector.broadcast %cst_67 : f32 to vector<8x384xf32>
    %215 = arith.addf %213, %214 : vector<8x384xf32>
    %216 = vector.extract_strided_slice %215 {offsets = [0, 0], sizes = [8, 128], strides = [1, 1]} : vector<8x384xf32> to vector<8x128xf32>
    %217 = vector.extract_strided_slice %215 {offsets = [0, 128], sizes = [8, 128], strides = [1, 1]} : vector<8x384xf32> to vector<8x128xf32>
    %218 = vector.extract_strided_slice %215 {offsets = [0, 256], sizes = [8, 128], strides = [1, 1]} : vector<8x384xf32> to vector<8x128xf32>
    %219 = vector.extract_strided_slice %207 {offsets = [0, 384], sizes = [8, 128], strides = [1, 1]} : vector<8x512xf32> to vector<8x128xf32>
    %220 = math.tanh %219 : vector<8x128xf32>
    %221 = arith.mulf %217, %195 : vector<8x128xf32>
    %222 = arith.mulf %216, %220 : vector<8x128xf32>
    %223 = arith.addf %221, %222 : vector<8x128xf32>
    %224 = math.tanh %223 : vector<8x128xf32>
    %225 = arith.mulf %218, %224 : vector<8x128xf32>
    %226 = arith.index_cast %c7_i32 : i32 to index
    %c0_68 = arith.constant 0 : index
    %c0_69 = arith.constant 0 : index
    %227 = vector.load %arg3[%226, %c0_68, %c0_69] : memref<8x8x128xf32, #tpu.memory_space<vmem>>, vector<1x8x128xf32>
    %228 = vector.shape_cast %227 : vector<1x8x128xf32> to vector<8x128xf32>
    %229 = vector.shape_cast %225 : vector<8x128xf32> to vector<1x8x128xf32>
    tpu.vector_store %arg3[%226, %c0_68, %c0_69], %229 {strides = array<i32>} : memref<8x8x128xf32, #tpu.memory_space<vmem>>, vector<1x8x128xf32>,
    %c8_i32 = arith.constant 8 : i32
    %c0_70 = arith.constant 0 : index
    %c0_71 = arith.constant 0 : index
    %230 = vector.load %arg4[%c0_70, %c0_71] : memref<8x128xf32, #tpu.memory_space<vmem>>, vector<8x128xf32>
    tpu.vector_store %arg4[%c0_70, %c0_71], %225 {strides = array<i32>} : memref<8x128xf32, #tpu.memory_space<vmem>>, vector<8x128xf32>,
    %c0_72 = arith.constant 0 : index
    %c0_73 = arith.constant 0 : index
    %231 = vector.load %arg5[%c0_72, %c0_73] : memref<8x128xf32, #tpu.memory_space<vmem>>, vector<8x128xf32>
    tpu.vector_store %arg5[%c0_72, %c0_73], %223 {strides = array<i32>} : memref<8x128xf32, #tpu.memory_space<vmem>>, vector<8x128xf32>,
    return
  }
  func.func @transform_0(%arg0: i32) -> (i32, i32, i32) {
    %c0_i32 = arith.constant 0 : i32
    %c0_i32_0 = arith.constant 0 : i32
    %c0_i32_1 = arith.constant 0 : i32
    return %arg0, %c0_i32, %c0_i32_0 : i32, i32, i32
  }
  func.func @transform_1(%arg0: i32) -> (i32, i32) {
    %c0_i32 = arith.constant 0 : i32
    %c0_i32_0 = arith.constant 0 : i32
    %c0_i32_1 = arith.constant 0 : i32
    return %c0_i32, %c0_i32_0 : i32, i32
  }
  func.func @transform_2(%arg0: i32) -> (i32, i32, i32) {
    %c0_i32 = arith.constant 0 : i32
    %c0_i32_0 = arith.constant 0 : i32
    %c0_i32_1 = arith.constant 0 : i32
    return %arg0, %c0_i32, %c0_i32_0 : i32, i32, i32
  }
}

</mosaic_0001>

<llo_original>
// kernel: tpu_custom_call.1
$region0: #{tpu_custom_call.1}
  #allocation0 [shape = 'u32[]', space=smem, size = 0x4, offset = 0x4, fixed_abs, tag = 'smem constant byte address 0x4 - core index']
  #allocation1 [shape = 'u32[144,128]{1,0:T(1,128)}', space=vmem, size = 0x12000, scoped, tag = 'internal scratch']
  #allocation2 [shape = 'f32[8,128]{1,0:T(8,128)}', space=vmem, size = 0x1000, scoped, tag = 'scratch operand']
  #allocation3 [shape = 'f32[8,128]{1,0:T(8,128)}', space=vmem, size = 0x1000, scoped, tag = 'scratch operand']
  %s0 = inlined_call_operand.hbm [shape: f32[8,8,512], index: 0, kind: input, shape index: {}]
  %s1 = inlined_call_operand.hbm [shape: bf16[128,512], index: 1, kind: input, shape index: {}]
  %s2 = inlined_call_operand.hbm [shape: f32[8,8,128], index: 2, kind: output, shape index: {}]
  %s3 = sld [smem:[#allocation0]]
  $region30: #{tpu_custom_call.1} parent=0
    _
  %s5 = ssub.s32 1, %s3
  %s6 = scalar_select 0, %s5, %s3
  $region1: #{tpu_custom_call.1} parent=0
    #allocation4 [shape = 'u8[131072]{0}', space=vmem, size = 0x20000, scoped, tag = 'input window, operand 0, single buffered']
    #allocation5 [shape = 's32[1]{0}', space=sflag, size = 0x4, scoped, tag = 'scoped memory for tpu_custom_call.1']
    #allocation6 [shape = 's32[1]{0}', space=sflag, size = 0x4, scoped, tag = 'scoped memory for tpu_custom_call.1']
    #allocation7 [shape = 'u8[131072]{0}', space=vmem, size = 0x20000, scoped, tag = 'input window, operand 1, single buffered']
    #allocation8 [shape = 's32[1]{0}', space=sflag, size = 0x4, scoped, tag = 'scoped memory for tpu_custom_call.1']
    #allocation9 [shape = 'u8[32768]{0}', space=vmem, size = 0x8000, scoped, tag = 'output window, operand 0, single buffered']
    %7 = vsyncpa [#allocation5], 0
    %8 = vsyncpa [#allocation8], 0
    %9 = vsyncpa [#allocation6], 0
    // Predicated region
    $region2: #{tpu_custom_call.1} parent=1 // pred_check
      _
    $region3: #{tpu_custom_call.1} parent=1 // pred_check_branch
      %11 = sbr.rel (0) target = $region5
    $region4: #{tpu_custom_call.1} parent=1 // pred_region
      %s13 = ssub.s32 4096, 4096
      %14 = vsyncadd [#allocation5], %s13
      %s15 = sshll.u32 [#allocation4], 4
      %s16 = int_to_ptr.vmem [resolvable:$true] %s15
      %21 = dma.hbm_to_vmem [thread:$0]  %s0, 4096, %s16, [#allocation5], 512, 512, 32
    $region5: #{tpu_custom_call.1} parent=1 // pred_fallthru
      _
    // Predicated region
    $region6: #{tpu_custom_call.1} parent=1 // pred_check
      _
    $region7: #{tpu_custom_call.1} parent=1 // pred_check_branch
      %23 = sbr.rel (0) target = $region9
    $region8: #{tpu_custom_call.1} parent=1 // pred_region
      %s25 = ssub.s32 4096, 4096
      %26 = vsyncadd [#allocation8], %s25
      %s27 = sshll.u32 [#allocation7], 4
      %s28 = int_to_ptr.vmem [resolvable:$true] %s27
      %33 = dma.hbm_to_vmem [thread:$0]  %s1, 4096, %s28, [#allocation8], 256, 256, 16
    $region9: #{tpu_custom_call.1} parent=1 // pred_fallthru
      _
    // Predicated region
    $region10: #{tpu_custom_call.1} parent=1 // pred_check
      _
    $region11: #{tpu_custom_call.1} parent=1 // pred_check_branch
      %35 = sbr.rel (0) target = $region13
    $region12: #{tpu_custom_call.1} parent=1 // pred_region
      %36 = dma.done [#allocation5], 4096
    $region13: #{tpu_custom_call.1} parent=1 // pred_fallthru
      _
    // Predicated region
    $region14: #{tpu_custom_call.1} parent=1 // pred_check
      _
    $region15: #{tpu_custom_call.1} parent=1 // pred_check_branch
      %38 = sbr.rel (0) target = $region17
    $region16: #{tpu_custom_call.1} parent=1 // pred_region
      %39 = dma.done [#allocation8], 4096
    $region17: #{tpu_custom_call.1} parent=1 // pred_fallthru
      _
    %p41 = scmp.eq.s32.totalorder 0, 0
    // Predicated region
    $region18: #{tpu_custom_call.1} parent=1 // pred_check
      %p42 = pneg %p41
    $region19: #{tpu_custom_call.1} parent=1 // pred_check_branch
      %44 = sbr.rel (%p42) target = $region21
    $region20: #{tpu_custom_call.1} parent=1 // pred_region
      %45 = vst [vmem:[#allocation2] sm:$0xff] 0.0
      %46 = vst [vmem:[#allocation3] sm:$0xff] 0.0
    $region21: #{tpu_custom_call.1} parent=1 // pred_fallthru
      _
    %v47 = vld [vmem:[#allocation7] sm:$0xff]
    %v48 = vld [vmem:[#allocation7 + $0x8] sm:$0xff]
    %v49 = vld [vmem:[#allocation7 + $0x10] sm:$0xff]
    %v50 = vld [vmem:[#allocation7 + $0x18] sm:$0xff]
    %v51 = vld [vmem:[#allocation7 + $0x20] sm:$0xff]
    %v52 = vld [vmem:[#allocation7 + $0x28] sm:$0xff]
    %v53 = vld [vmem:[#allocation7 + $0x30] sm:$0xff]
    %v54 = vld [vmem:[#allocation7 + $0x38] sm:$0xff]
    %v55 = vld [vmem:[#allocation7 + $0x40] sm:$0xff]
    %v56 = vld [vmem:[#allocation7 + $0x48] sm:$0xff]
    %v57 = vld [vmem:[#allocation7 + $0x50] sm:$0xff]
    %v58 = vld [vmem:[#allocation7 + $0x58] sm:$0xff]
    %v59 = vld [vmem:[#allocation7 + $0x60] sm:$0xff]
    %v60 = vld [vmem:[#allocation7 + $0x68] sm:$0xff]
    %v61 = vld [vmem:[#allocation7 + $0x70] sm:$0xff]
    %v62 = vld [vmem:[#allocation7 + $0x78] sm:$0xff]
    %v63 = vld [vmem:[#allocation7 + $0x80] sm:$0xff]
    %v64 = vld [vmem:[#allocation7 + $0x88] sm:$0xff]
    %v65 = vld [vmem:[#allocation7 + $0x90] sm:$0xff]
    %v66 = vld [vmem:[#allocation7 + $0x98] sm:$0xff]
    %v67 = vld [vmem:[#allocation7 + $0xa0] sm:$0xff]
    %v68 = vld [vmem:[#allocation7 + $0xa8] sm:$0xff]
    %v69 = vld [vmem:[#allocation7 + $0xb0] sm:$0xff]
    %v70 = vld [vmem:[#allocation7 + $0xb8] sm:$0xff]
    %v71 = vld [vmem:[#allocation7 + $0xc0] sm:$0xff]
    %v72 = vld [vmem:[#allocation7 + $0xc8] sm:$0xff]
    %v73 = vld [vmem:[#allocation7 + $0xd0] sm:$0xff]
    %v74 = vld [vmem:[#allocation7 + $0xd8] sm:$0xff]
    %v75 = vld [vmem:[#allocation7 + $0xe0] sm:$0xff]
    %v76 = vld [vmem:[#allocation7 + $0xe8] sm:$0xff]
    %v77 = vld [vmem:[#allocation7 + $0xf0] sm:$0xff]
    %v78 = vld [vmem:[#allocation7 + $0xf8] sm:$0xff]
    %v79 = vld [vmem:[#allocation2] sm:$0xff]
    %v80 = vld [vmem:[#allocation3] sm:$0xff]
    %v81 = vld [vmem:[#allocation4] sm:$0xff]
    %v82 = vld [vmem:[#allocation4 + $0x8] sm:$0xff]
    %v83 = vld [vmem:[#allocation4 + $0x10] sm:$0xff]
    %v84 = vld [vmem:[#allocation4 + $0x18] sm:$0xff]
    %v85 = vpack.c.bf16 %v79, %v79
    %v118 = vunpack.c.l.b16 %v47
    %v119 = vunpack.c.h.b16 %v47
    %v120 = vunpack.c.l.b16 %v48
    %v121 = vunpack.c.h.b16 %v48
    %v122 = vunpack.c.l.b16 %v49
    %v123 = vunpack.c.h.b16 %v49
    %v124 = vunpack.c.l.b16 %v50
    %v125 = vunpack.c.h.b16 %v50
    %v126 = vunpack.c.l.b16 %v51
    %v127 = vunpack.c.h.b16 %v51
    %v128 = vunpack.c.l.b16 %v52
    %v129 = vunpack.c.h.b16 %v52
    %v130 = vunpack.c.l.b16 %v53
    %v131 = vunpack.c.h.b16 %v53
    %v132 = vunpack.c.l.b16 %v54
    %v133 = vunpack.c.h.b16 %v54
    %v134 = vunpack.c.l.b16 %v55
    %v135 = vunpack.c.h.b16 %v55
    %v136 = vunpack.c.l.b16 %v56
    %v137 = vunpack.c.h.b16 %v56
    %v138 = vunpack.c.l.b16 %v57
    %v139 = vunpack.c.h.b16 %v57
    %v140 = vunpack.c.l.b16 %v58
    %v141 = vunpack.c.h.b16 %v58
    %v142 = vunpack.c.l.b16 %v59
    %v143 = vunpack.c.h.b16 %v59
    %v144 = vunpack.c.l.b16 %v60
    %v145 = vunpack.c.h.b16 %v60
    %v146 = vunpack.c.l.b16 %v61
    %v147 = vunpack.c.h.b16 %v61
    %v148 = vunpack.c.l.b16 %v62
    %v149 = vunpack.c.h.b16 %v62
    %v150 = vunpack.c.l.b16 %v63
    %v151 = vunpack.c.h.b16 %v63
    %v152 = vunpack.c.l.b16 %v64
    %v153 = vunpack.c.h.b16 %v64
    %v154 = vunpack.c.l.b16 %v65
    %v155 = vunpack.c.h.b16 %v65
    %v156 = vunpack.c.l.b16 %v66
    %v157 = vunpack.c.h.b16 %v66
    %v158 = vunpack.c.l.b16 %v67
    %v159 = vunpack.c.h.b16 %v67
    %v160 = vunpack.c.l.b16 %v68
    %v161 = vunpack.c.h.b16 %v68
    %v162 = vunpack.c.l.b16 %v69
    %v163 = vunpack.c.h.b16 %v69
    %v164 = vunpack.c.l.b16 %v70
    %v165 = vunpack.c.h.b16 %v70
    %v166 = vunpack.c.l.b16 %v71
    %v167 = vunpack.c.h.b16 %v71
    %v168 = vunpack.c.l.b16 %v72
    %v169 = vunpack.c.h.b16 %v72
    %v170 = vunpack.c.l.b16 %v73
    %v171 = vunpack.c.h.b16 %v73
    %v172 = vunpack.c.l.b16 %v74
    %v173 = vunpack.c.h.b16 %v74
    %v174 = vunpack.c.l.b16 %v75
    %v175 = vunpack.c.h.b16 %v75
    %v176 = vunpack.c.l.b16 %v76
    %v177 = vunpack.c.h.b16 %v76
    %v178 = vunpack.c.l.b16 %v77
    %v179 = vunpack.c.h.b16 %v77
    %v180 = vunpack.c.l.b16 %v78
    %v181 = vunpack.c.h.b16 %v78
    %v182 = vpack.c.b16 %v122, %v118
    %v183 = vpack.c.b16 %v123, %v119
    %v184 = vpack.c.b16 %v124, %v120
    %v185 = vpack.c.b16 %v125, %v121
    %v186 = vpack.c.b16 %v130, %v126
    %v187 = vpack.c.b16 %v131, %v127
    %v188 = vpack.c.b16 %v132, %v128
    %v189 = vpack.c.b16 %v133, %v129
    %v190 = vpack.c.b16 %v138, %v134
    %v191 = vpack.c.b16 %v139, %v135
    %v192 = vpack.c.b16 %v140, %v136
    %v193 = vpack.c.b16 %v141, %v137
    %v194 = vpack.c.b16 %v146, %v142
    %v195 = vpack.c.b16 %v147, %v143
    %v196 = vpack.c.b16 %v148, %v144
    %v197 = vpack.c.b16 %v149, %v145
    %v198 = vpack.c.b16 %v154, %v150
    %v199 = vpack.c.b16 %v155, %v151
    %v200 = vpack.c.b16 %v156, %v152
    %v201 = vpack.c.b16 %v157, %v153
    %v202 = vpack.c.b16 %v162, %v158
    %v203 = vpack.c.b16 %v163, %v159
    %v204 = vpack.c.b16 %v164, %v160
    %v205 = vpack.c.b16 %v165, %v161
    %v206 = vpack.c.b16 %v170, %v166
    %v207 = vpack.c.b16 %v171, %v167
    %v208 = vpack.c.b16 %v172, %v168
    %v209 = vpack.c.b16 %v173, %v169
    %v210 = vpack.c.b16 %v178, %v174
    %v211 = vpack.c.b16 %v179, %v175
    %v212 = vpack.c.b16 %v180, %v176
    %v213 = vpack.c.b16 %v181, %v177
    %246 = vmatprep.subr.bf16.mxu0 %v183
    %247 = vmatpush1.bf16.msra.mxu0 %v182
    %248 = vmatprep.subr.bf16.mxu0 %v187
    %249 = vmatpush1.bf16.msra.mxu0 %v186
    %250 = vmatprep.subr.bf16.mxu0 %v191
    %251 = vmatpush1.bf16.msra.mxu0 %v190
    %252 = vmatprep.subr.bf16.mxu0 %v195
    %253 = vmatpush1.bf16.msra.mxu0 %v194
    %254 = vmatprep.subr.bf16.mxu0 %v199
    %255 = vmatpush1.bf16.msra.mxu0 %v198
    %256 = vmatprep.subr.bf16.mxu0 %v203
    %257 = vmatpush1.bf16.msra.mxu0 %v202
    %258 = vmatprep.subr.bf16.mxu0 %v207
    %259 = vmatpush1.bf16.msra.mxu0 %v206
    %260 = vmatprep.subr.bf16.mxu0 %v211
    %261 = vmatpush1.bf16.msra.mxu0 %v210
    %262 = vmatprep.subr.bf16.mxu0 0
    %263 = vmatpush1.bf16.msra.mxu0 0
    %264 = vmatprep.subr.bf16.mxu0 0
    %265 = vmatpush1.bf16.msra.mxu0 0
    %266 = vmatprep.subr.bf16.mxu0 0
    %267 = vmatpush1.bf16.msra.mxu0 0
    %268 = vmatprep.subr.bf16.mxu0 0
    %269 = vmatpush1.bf16.msra.mxu0 0
    %270 = vmatprep.subr.bf16.mxu0 0
    %271 = vmatpush1.bf16.msra.mxu0 0
    %272 = vmatprep.subr.bf16.mxu0 0
    %273 = vmatpush1.bf16.msra.mxu0 0
    %274 = vmatprep.subr.bf16.mxu0 0
    %275 = vmatpush1.bf16.msra.mxu0 0
    %276 = vmatprep.subr.bf16.mxu0 0
    %277 = vmatpush1.bf16.msra.mxu0 0
    %278 = vmatprep.mubr.bf16.mxu0 0
    %279 = vmatmul.mubr.bf16.gmra.mrb[0].mxu0 %v85
    %v280 = vpop.f32.mrb[0].mxu0
    %v281 = vadd.f32 0.0, %v280
    %v282 = vpop.f32.mrb[0].mxu0
    %v283 = vadd.f32 0.0, %v282
    %v284 = vpop.f32.mrb[0].mxu0
    %v285 = vpop.f32.mrb[0].mxu0
    %286 = vdwg.mxu0
    %287 = vmatprep.subr.bf16.mxu0 %v185
    %288 = vmatpush1.bf16.msra.mxu0 %v184
    %289 = vmatprep.subr.bf16.mxu0 %v189
    %290 = vmatpush1.bf16.msra.mxu0 %v188
    %291 = vmatprep.subr.bf16.mxu0 %v193
    %292 = vmatpush1.bf16.msra.mxu0 %v192
    %293 = vmatprep.subr.bf16.mxu0 %v197
    %294 = vmatpush1.bf16.msra.mxu0 %v196
    %295 = vmatprep.subr.bf16.mxu0 %v201
    %296 = vmatpush1.bf16.msra.mxu0 %v200
    %297 = vmatprep.subr.bf16.mxu0 %v205
    %298 = vmatpush1.bf16.msra.mxu0 %v204
    %299 = vmatprep.subr.bf16.mxu0 %v209
    %300 = vmatpush1.bf16.msra.mxu0 %v208
    %301 = vmatprep.subr.bf16.mxu0 %v213
    %302 = vmatpush1.bf16.msra.mxu0 %v212
    %303 = vmatprep.subr.bf16.mxu0 0
    %304 = vmatpush1.bf16.msra.mxu0 0
    %305 = vmatprep.subr.bf16.mxu0 0
    %306 = vmatpush1.bf16.msra.mxu0 0
    %307 = vmatprep.subr.bf16.mxu0 0
    %308 = vmatpush1.bf16.msra.mxu0 0
    %309 = vmatprep.subr.bf16.mxu0 0
    %310 = vmatpush1.bf16.msra.mxu0 0
    %311 = vmatprep.subr.bf16.mxu0 0
    %312 = vmatpush1.bf16.msra.mxu0 0
    %313 = vmatprep.subr.bf16.mxu0 0
    %314 = vmatpush1.bf16.msra.mxu0 0
    %315 = vmatprep.subr.bf16.mxu0 0
    %316 = vmatpush1.bf16.msra.mxu0 0
    %317 = vmatprep.subr.bf16.mxu0 0
    %318 = vmatpush1.bf16.msra.mxu0 0
    %319 = vmatprep.mubr.bf16.mxu0 0
    %320 = vmatmul.mubr.bf16.gmra.mrb[0].mxu0 %v85
    %v321 = vpop.f32.mrb[0].mxu0
    %v322 = vadd.f32 0.0, %v321
    %v323 = vpop.f32.mrb[0].mxu0
    %v324 = vadd.f32 0.0, %v323
    %v325 = vpop.f32.mrb[0].mxu0
    %v326 = vpop.f32.mrb[0].mxu0
    %327 = vdwg.mxu0
    %v328 = vadd.f32 %v81, %v281
    %v329 = vadd.f32 %v82, %v283
    %v330 = vadd.f32 %v83, %v322
    %v331 = vadd.f32 %v84, %v324
    %v332 = vmul.f32 %v328, 0.5
    %v333 = vmul.f32 %v329, 0.5
    %v334 = vmul.f32 %v330, 0.5
    %v335 = vtanh.pop %v332
    %v336 = vtanh.pop %v333
    %v337 = vtanh.pop %v334
    %v338 = vmul.f32 %v335, 0.5
    %v339 = vmul.f32 %v336, 0.5
    %v340 = vmul.f32 %v337, 0.5
    %v341 = vadd.f32 %v338, 0.5
    %v342 = vadd.f32 %v339, 0.5
    %v343 = vadd.f32 %v340, 0.5
    %v344 = vtanh.pop %v331
    %v345 = vmul.f32 %v342, %v80
    %v346 = vmul.f32 %v341, %v344
    %v347 = vadd.f32 %v345, %v346
    %v348 = vtanh.pop %v347
    %v349 = vmul.f32 %v343, %v348
    %350 = vst [vmem:[#allocation9] sm:$0xff] %v349
    %s351 = scalar_lea.vmem [#allocation4], 32
    %v352 = vld [vmem:[%s351] sm:$0xff]
    %v353 = vld [vmem:[%s351 + $0x8] sm:$0xff]
    %v354 = vld [vmem:[%s351 + $0x10] sm:$0xff]
    %v355 = vld [vmem:[%s351 + $0x18] sm:$0xff]
    %v356 = vpack.c.bf16 %v349, %v349
    %357 = vmatprep.subr.bf16.mxu0 %v183
    %358 = vmatpush1.bf16.msra.mxu0 %v182
    %359 = vmatprep.subr.bf16.mxu0 %v187
    %360 = vmatpush1.bf16.msra.mxu0 %v186
    %361 = vmatprep.subr.bf16.mxu0 %v191
    %362 = vmatpush1.bf16.msra.mxu0 %v190
    %363 = vmatprep.subr.bf16.mxu0 %v195
    %364 = vmatpush1.bf16.msra.mxu0 %v194
    %365 = vmatprep.subr.bf16.mxu0 %v199
    %366 = vmatpush1.bf16.msra.mxu0 %v198
    %367 = vmatprep.subr.bf16.mxu0 %v203
    %368 = vmatpush1.bf16.msra.mxu0 %v202
    %369 = vmatprep.subr.bf16.mxu0 %v207
    %370 = vmatpush1.bf16.msra.mxu0 %v206
    %371 = vmatprep.subr.bf16.mxu0 %v211
    %372 = vmatpush1.bf16.msra.mxu0 %v210
    %373 = vmatprep.subr.bf16.mxu0 0
    %374 = vmatpush1.bf16.msra.mxu0 0
    %375 = vmatprep.subr.bf16.mxu0 0
    %376 = vmatpush1.bf16.msra.mxu0 0
    %377 = vmatprep.subr.bf16.mxu0 0
    %378 = vmatpush1.bf16.msra.mxu0 0
    %379 = vmatprep.subr.bf16.mxu0 0
    %380 = vmatpush1.bf16.msra.mxu0 0
    %381 = vmatprep.subr.bf16.mxu0 0
    %382 = vmatpush1.bf16.msra.mxu0 0
    %383 = vmatprep.subr.bf16.mxu0 0
    %384 = vmatpush1.bf16.msra.mxu0 0
    %385 = vmatprep.subr.bf16.mxu0 0
    %386 = vmatpush1.bf16.msra.mxu0 0
    %387 = vmatprep.subr.bf16.mxu0 0
    %388 = vmatpush1.bf16.msra.mxu0 0
    %389 = vmatprep.mubr.bf16.mxu0 0
    %390 = vmatmul.mubr.bf16.gmra.mrb[0].mxu0 %v356
    %v391 = vpop.f32.mrb[0].mxu0
    %v392 = vadd.f32 0.0, %v391
    %v393 = vpop.f32.mrb[0].mxu0
    %v394 = vadd.f32 0.0, %v393
    %v395 = vpop.f32.mrb[0].mxu0
    %v396 = vpop.f32.mrb[0].mxu0
    %397 = vdwg.mxu0
    %398 = vmatprep.subr.bf16.mxu0 %v185
    %399 = vmatpush1.bf16.msra.mxu0 %v184
    %400 = vmatprep.subr.bf16.mxu0 %v189
    %401 = vmatpush1.bf16.msra.mxu0 %v188
    %402 = vmatprep.subr.bf16.mxu0 %v193
    %403 = vmatpush1.bf16.msra.mxu0 %v192
    %404 = vmatprep.subr.bf16.mxu0 %v197
    %405 = vmatpush1.bf16.msra.mxu0 %v196
    %406 = vmatprep.subr.bf16.mxu0 %v201
    %407 = vmatpush1.bf16.msra.mxu0 %v200
    %408 = vmatprep.subr.bf16.mxu0 %v205
    %409 = vmatpush1.bf16.msra.mxu0 %v204
    %410 = vmatprep.subr.bf16.mxu0 %v209
    %411 = vmatpush1.bf16.msra.mxu0 %v208
    %412 = vmatprep.subr.bf16.mxu0 %v213
    %413 = vmatpush1.bf16.msra.mxu0 %v212
    %414 = vmatprep.subr.bf16.mxu0 0
    %415 = vmatpush1.bf16.msra.mxu0 0
    %416 = vmatprep.subr.bf16.mxu0 0
    %417 = vmatpush1.bf16.msra.mxu0 0
    %418 = vmatprep.subr.bf16.mxu0 0
    %419 = vmatpush1.bf16.msra.mxu0 0
    %420 = vmatprep.subr.bf16.mxu0 0
    %421 = vmatpush1.bf16.msra.mxu0 0
    %422 = vmatprep.subr.bf16.mxu0 0
    %423 = vmatpush1.bf16.msra.mxu0 0
    %424 = vmatprep.subr.bf16.mxu0 0
    %425 = vmatpush1.bf16.msra.mxu0 0
    %426 = vmatprep.subr.bf16.mxu0 0
    %427 = vmatpush1.bf16.msra.mxu0 0
    %428 = vmatprep.subr.bf16.mxu0 0
    %429 = vmatpush1.bf16.msra.mxu0 0
    %430 = vmatprep.mubr.bf16.mxu0 0
    %431 = vmatmul.mubr.bf16.gmra.mrb[0].mxu0 %v356
    %v432 = vpop.f32.mrb[0].mxu0
    %v433 = vadd.f32 0.0, %v432
    %v434 = vpop.f32.mrb[0].mxu0
    %v435 = vadd.f32 0.0, %v434
    %v436 = vpop.f32.mrb[0].mxu0
    %v437 = vpop.f32.mrb[0].mxu0
    %438 = vdwg.mxu0
    %v439 = vadd.f32 %v352, %v392
    %v440 = vadd.f32 %v353, %v394
    %v441 = vadd.f32 %v354, %v433
    %v442 = vadd.f32 %v355, %v435
    %v443 = vmul.f32 %v439, 0.5
    %v444 = vmul.f32 %v440, 0.5
    %v445 = vmul.f32 %v441, 0.5
    %v446 = vtanh.pop %v443
    %v447 = vtanh.pop %v444
    %v448 = vtanh.pop %v445
    %v449 = vmul.f32 %v446, 0.5
    %v450 = vmul.f32 %v447, 0.5
    %v451 = vmul.f32 %v448, 0.5
    %v452 = vadd.f32 %v449, 0.5
    %v453 = vadd.f32 %v450, 0.5
    %v454 = vadd.f32 %v451, 0.5
    %v455 = vtanh.pop %v442
    %v456 = vmul.f32 %v453, %v347
    %v457 = vmul.f32 %v452, %v455
    %v458 = vadd.f32 %v456, %v457
    %v459 = vtanh.pop %v458
    %v460 = vmul.f32 %v454, %v459
    %s461 = scalar_lea.vmem [#allocation9], 8
    %462 = vst [vmem:[%s461] sm:$0xff] %v460
    %s463 = scalar_lea.vmem [#allocation4], 64
    %v464 = vld [vmem:[%s463] sm:$0xff]
    %v465 = vld [vmem:[%s463 + $0x8] sm:$0xff]
    %v466 = vld [vmem:[%s463 + $0x10] sm:$0xff]
    %v467 = vld [vmem:[%s463 + $0x18] sm:$0xff]
    %v468 = vpack.c.bf16 %v460, %v460
    %469 = vmatprep.subr.bf16.mxu0 %v183
    %470 = vmatpush1.bf16.msra.mxu0 %v182
    %471 = vmatprep.subr.bf16.mxu0 %v187
    %472 = vmatpush1.bf16.msra.mxu0 %v186
    %473 = vmatprep.subr.bf16.mxu0 %v191
    %474 = vmatpush1.bf16.msra.mxu0 %v190
    %475 = vmatprep.subr.bf16.mxu0 %v195
    %476 = vmatpush1.bf16.msra.mxu0 %v194
    %477 = vmatprep.subr.bf16.mxu0 %v199
    %478 = vmatpush1.bf16.msra.mxu0 %v198
    %479 = vmatprep.subr.bf16.mxu0 %v203
    %480 = vmatpush1.bf16.msra.mxu0 %v202
    %481 = vmatprep.subr.bf16.mxu0 %v207
    %482 = vmatpush1.bf16.msra.mxu0 %v206
    %483 = vmatprep.subr.bf16.mxu0 %v211
    %484 = vmatpush1.bf16.msra.mxu0 %v210
    %485 = vmatprep.subr.bf16.mxu0 0
    %486 = vmatpush1.bf16.msra.mxu0 0
    %487 = vmatprep.subr.bf16.mxu0 0
    %488 = vmatpush1.bf16.msra.mxu0 0
    %489 = vmatprep.subr.bf16.mxu0 0
    %490 = vmatpush1.bf16.msra.mxu0 0
    %491 = vmatprep.subr.bf16.mxu0 0
    %492 = vmatpush1.bf16.msra.mxu0 0
    %493 = vmatprep.subr.bf16.mxu0 0
    %494 = vmatpush1.bf16.msra.mxu0 0
    %495 = vmatprep.subr.bf16.mxu0 0
    %496 = vmatpush1.bf16.msra.mxu0 0
    %497 = vmatprep.subr.bf16.mxu0 0
    %498 = vmatpush1.bf16.msra.mxu0 0
    %499 = vmatprep.subr.bf16.mxu0 0
    %500 = vmatpush1.bf16.msra.mxu0 0
    %501 = vmatprep.mubr.bf16.mxu0 0
    %502 = vmatmul.mubr.bf16.gmra.mrb[0].mxu0 %v468
    %v503 = vpop.f32.mrb[0].mxu0
    %v504 = vadd.f32 0.0, %v503
    %v505 = vpop.f32.mrb[0].mxu0
    %v506 = vadd.f32 0.0, %v505
    %v507 = vpop.f32.mrb[0].mxu0
    %v508 = vpop.f32.mrb[0].mxu0
    %509 = vdwg.mxu0
    %510 = vmatprep.subr.bf16.mxu0 %v185
    %511 = vmatpush1.bf16.msra.mxu0 %v184
    %512 = vmatprep.subr.bf16.mxu0 %v189
    %513 = vmatpush1.bf16.msra.mxu0 %v188
    %514 = vmatprep.subr.bf16.mxu0 %v193
    %515 = vmatpush1.bf16.msra.mxu0 %v192
    %516 = vmatprep.subr.bf16.mxu0 %v197
    %517 = vmatpush1.bf16.msra.mxu0 %v196
    %518 = vmatprep.subr.bf16.mxu0 %v201
    %519 = vmatpush1.bf16.msra.mxu0 %v200
    %520 = vmatprep.subr.bf16.mxu0 %v205
    %521 = vmatpush1.bf16.msra.mxu0 %v204
    %522 = vmatprep.subr.bf16.mxu0 %v209
    %523 = vmatpush1.bf16.msra.mxu0 %v208
    %524 = vmatprep.subr.bf16.mxu0 %v213
    %525 = vmatpush1.bf16.msra.mxu0 %v212
    %526 = vmatprep.subr.bf16.mxu0 0
    %527 = vmatpush1.bf16.msra.mxu0 0
    %528 = vmatprep.subr.bf16.mxu0 0
    %529 = vmatpush1.bf16.msra.mxu0 0
    %530 = vmatprep.subr.bf16.mxu0 0
    %531 = vmatpush1.bf16.msra.mxu0 0
    %532 = vmatprep.subr.bf16.mxu0 0
    %533 = vmatpush1.bf16.msra.mxu0 0
    %534 = vmatprep.subr.bf16.mxu0 0
    %535 = vmatpush1.bf16.msra.mxu0 0
    %536 = vmatprep.subr.bf16.mxu0 0
    %537 = vmatpush1.bf16.msra.mxu0 0
    %538 = vmatprep.subr.bf16.mxu0 0
    %539 = vmatpush1.bf16.msra.mxu0 0
    %540 = vmatprep.subr.bf16.mxu0 0
    %541 = vmatpush1.bf16.msra.mxu0 0
    %542 = vmatprep.mubr.bf16.mxu0 0
    %543 = vmatmul.mubr.bf16.gmra.mrb[0].mxu0 %v468
    %v544 = vpop.f32.mrb[0].mxu0
    %v545 = vadd.f32 0.0, %v544
    %v546 = vpop.f32.mrb[0].mxu0
    %v547 = vadd.f32 0.0, %v546
    %v548 = vpop.f32.mrb[0].mxu0
    %v549 = vpop.f32.mrb[0].mxu0
    %550 = vdwg.mxu0
    %v551 = vadd.f32 %v464, %v504
    %v552 = vadd.f32 %v465, %v506
    %v553 = vadd.f32 %v466, %v545
    %v554 = vadd.f32 %v467, %v547
    %v555 = vmul.f32 %v551, 0.5
    %v556 = vmul.f32 %v552, 0.5
    %v557 = vmul.f32 %v553, 0.5
    %v558 = vtanh.pop %v555
    %v559 = vtanh.pop %v556
    %v560 = vtanh.pop %v557
    %v561 = vmul.f32 %v558, 0.5
    %v562 = vmul.f32 %v559, 0.5
    %v563 = vmul.f32 %v560, 0.5
    %v564 = vadd.f32 %v561, 0.5
    %v565 = vadd.f32 %v562, 0.5
    %v566 = vadd.f32 %v563, 0.5
    %v567 = vtanh.pop %v554
    %v568 = vmul.f32 %v565, %v458
    %v569 = vmul.f32 %v564, %v567
    %v570 = vadd.f32 %v568, %v569
    %v571 = vtanh.pop %v570
    %v572 = vmul.f32 %v566, %v571
    %s573 = scalar_lea.vmem [#allocation9], 16
    %574 = vst [vmem:[%s573] sm:$0xff] %v572
    %s575 = scalar_lea.vmem [#allocation4], 96
    %v576 = vld [vmem:[%s575] sm:$0xff]
    %v577 = vld [vmem:[%s575 + $0x8] sm:$0xff]
    %v578 = vld [vmem:[%s575 + $0x10] sm:$0xff]
    %v579 = vld [vmem:[%s575 + $0x18] sm:$0xff]
    %v580 = vpack.c.bf16 %v572, %v572
    %581 = vmatprep.subr.bf16.mxu0 %v183
    %582 = vmatpush1.bf16.msra.mxu0 %v182
    %583 = vmatprep.subr.bf16.mxu0 %v187
    %584 = vmatpush1.bf16.msra.mxu0 %v186
    %585 = vmatprep.subr.bf16.mxu0 %v191
    %586 = vmatpush1.bf16.msra.mxu0 %v190
    %587 = vmatprep.subr.bf16.mxu0 %v195
    %588 = vmatpush1.bf16.msra.mxu0 %v194
    %589 = vmatprep.subr.bf16.mxu0 %v199
    %590 = vmatpush1.bf16.msra.mxu0 %v198
    %591 = vmatprep.subr.bf16.mxu0 %v203
    %592 = vmatpush1.bf16.msra.mxu0 %v202
    %593 = vmatprep.subr.bf16.mxu0 %v207
    %594 = vmatpush1.bf16.msra.mxu0 %v206
    %595 = vmatprep.subr.bf16.mxu0 %v211
    %596 = vmatpush1.bf16.msra.mxu0 %v210
    %597 = vmatprep.subr.bf16.mxu0 0
    %598 = vmatpush1.bf16.msra.mxu0 0
    %599 = vmatprep.subr.bf16.mxu0 0
    %600 = vmatpush1.bf16.msra.mxu0 0
    %601 = vmatprep.subr.bf16.mxu0 0
    %602 = vmatpush1.bf16.msra.mxu0 0
    %603 = vmatprep.subr.bf16.mxu0 0
    %604 = vmatpush1.bf16.msra.mxu0 0
    %605 = vmatprep.subr.bf16.mxu0 0
    %606 = vmatpush1.bf16.msra.mxu0 0
    %607 = vmatprep.subr.bf16.mxu0 0
    %608 = vmatpush1.bf16.msra.mxu0 0
    %609 = vmatprep.subr.bf16.mxu0 0
    %610 = vmatpush1.bf16.msra.mxu0 0
    %611 = vmatprep.subr.bf16.mxu0 0
    %612 = vmatpush1.bf16.msra.mxu0 0
    %613 = vmatprep.mubr.bf16.mxu0 0
    %614 = vmatmul.mubr.bf16.gmra.mrb[0].mxu0 %v580
    %v615 = vpop.f32.mrb[0].mxu0
    %v616 = vadd.f32 0.0, %v615
    %v617 = vpop.f32.mrb[0].mxu0
    %v618 = vadd.f32 0.0, %v617
    %v619 = vpop.f32.mrb[0].mxu0
    %v620 = vpop.f32.mrb[0].mxu0
    %621 = vdwg.mxu0
    %622 = vmatprep.subr.bf16.mxu0 %v185
    %623 = vmatpush1.bf16.msra.mxu0 %v184
    %624 = vmatprep.subr.bf16.mxu0 %v189
    %625 = vmatpush1.bf16.msra.mxu0 %v188
    %626 = vmatprep.subr.bf16.mxu0 %v193
    %627 = vmatpush1.bf16.msra.mxu0 %v192
    %628 = vmatprep.subr.bf16.mxu0 %v197
    %629 = vmatpush1.bf16.msra.mxu0 %v196
    %630 = vmatprep.subr.bf16.mxu0 %v201
    %631 = vmatpush1.bf16.msra.mxu0 %v200
    %632 = vmatprep.subr.bf16.mxu0 %v205
    %633 = vmatpush1.bf16.msra.mxu0 %v204
    %634 = vmatprep.subr.bf16.mxu0 %v209
    %635 = vmatpush1.bf16.msra.mxu0 %v208
    %636 = vmatprep.subr.bf16.mxu0 %v213
    %637 = vmatpush1.bf16.msra.mxu0 %v212
    %638 = vmatprep.subr.bf16.mxu0 0
    %639 = vmatpush1.bf16.msra.mxu0 0
    %640 = vmatprep.subr.bf16.mxu0 0
    %641 = vmatpush1.bf16.msra.mxu0 0
    %642 = vmatprep.subr.bf16.mxu0 0
    %643 = vmatpush1.bf16.msra.mxu0 0
    %644 = vmatprep.subr.bf16.mxu0 0
    %645 = vmatpush1.bf16.msra.mxu0 0
    %646 = vmatprep.subr.bf16.mxu0 0
    %647 = vmatpush1.bf16.msra.mxu0 0
    %648 = vmatprep.subr.bf16.mxu0 0
    %649 = vmatpush1.bf16.msra.mxu0 0
    %650 = vmatprep.subr.bf16.mxu0 0
    %651 = vmatpush1.bf16.msra.mxu0 0
    %652 = vmatprep.subr.bf16.mxu0 0
    %653 = vmatpush1.bf16.msra.mxu0 0
    %654 = vmatprep.mubr.bf16.mxu0 0
    %655 = vmatmul.mubr.bf16.gmra.mrb[0].mxu0 %v580
    %v656 = vpop.f32.mrb[0].mxu0
    %v657 = vadd.f32 0.0, %v656
    %v658 = vpop.f32.mrb[0].mxu0
    %v659 = vadd.f32 0.0, %v658
    %v660 = vpop.f32.mrb[0].mxu0
    %v661 = vpop.f32.mrb[0].mxu0
    %662 = vdwg.mxu0
    %v663 = vadd.f32 %v576, %v616
    %v664 = vadd.f32 %v577, %v618
    %v665 = vadd.f32 %v578, %v657
    %v666 = vadd.f32 %v579, %v659
    %v667 = vmul.f32 %v663, 0.5
    %v668 = vmul.f32 %v664, 0.5
    %v669 = vmul.f32 %v665, 0.5
    %v670 = vtanh.pop %v667
    %v671 = vtanh.pop %v668
    %v672 = vtanh.pop %v669
    %v673 = vmul.f32 %v670, 0.5
    %v674 = vmul.f32 %v671, 0.5
    %v675 = vmul.f32 %v672, 0.5
    %v676 = vadd.f32 %v673, 0.5
    %v677 = vadd.f32 %v674, 0.5
    %v678 = vadd.f32 %v675, 0.5
    %v679 = vtanh.pop %v666
    %v680 = vmul.f32 %v677, %v570
    %v681 = vmul.f32 %v676, %v679
    %v682 = vadd.f32 %v680, %v681
    %v683 = vtanh.pop %v682
    %v684 = vmul.f32 %v678, %v683
    %s685 = scalar_lea.vmem [#allocation9], 24
    %686 = vst [vmem:[%s685] sm:$0xff] %v684
    %s687 = scalar_lea.vmem [#allocation4], 128
    %v688 = vld [vmem:[%s687] sm:$0xff]
    %v689 = vld [vmem:[%s687 + $0x8] sm:$0xff]
    %v690 = vld [vmem:[%s687 + $0x10] sm:$0xff]
    %v691 = vld [vmem:[%s687 + $0x18] sm:$0xff]
    %v692 = vpack.c.bf16 %v684, %v684
    %693 = vmatprep.subr.bf16.mxu0 %v183
    %694 = vmatpush1.bf16.msra.mxu0 %v182
    %695 = vmatprep.subr.bf16.mxu0 %v187
    %696 = vmatpush1.bf16.msra.mxu0 %v186
    %697 = vmatprep.subr.bf16.mxu0 %v191
    %698 = vmatpush1.bf16.msra.mxu0 %v190
    %699 = vmatprep.subr.bf16.mxu0 %v195
    %700 = vmatpush1.bf16.msra.mxu0 %v194
    %701 = vmatprep.subr.bf16.mxu0 %v199
    %702 = vmatpush1.bf16.msra.mxu0 %v198
    %703 = vmatprep.subr.bf16.mxu0 %v203
    %704 = vmatpush1.bf16.msra.mxu0 %v202
    %705 = vmatprep.subr.bf16.mxu0 %v207
    %706 = vmatpush1.bf16.msra.mxu0 %v206
    %707 = vmatprep.subr.bf16.mxu0 %v211
    %708 = vmatpush1.bf16.msra.mxu0 %v210
    %709 = vmatprep.subr.bf16.mxu0 0
    %710 = vmatpush1.bf16.msra.mxu0 0
    %711 = vmatprep.subr.bf16.mxu0 0
    %712 = vmatpush1.bf16.msra.mxu0 0
    %713 = vmatprep.subr.bf16.mxu0 0
    %714 = vmatpush1.bf16.msra.mxu0 0
    %715 = vmatprep.subr.bf16.mxu0 0
    %716 = vmatpush1.bf16.msra.mxu0 0
    %717 = vmatprep.subr.bf16.mxu0 0
    %718 = vmatpush1.bf16.msra.mxu0 0
    %719 = vmatprep.subr.bf16.mxu0 0
    %720 = vmatpush1.bf16.msra.mxu0 0
    %721 = vmatprep.subr.bf16.mxu0 0
    %722 = vmatpush1.bf16.msra.mxu0 0
    %723 = vmatprep.subr.bf16.mxu0 0
    %724 = vmatpush1.bf16.msra.mxu0 0
    %725 = vmatprep.mubr.bf16.mxu0 0
    %726 = vmatmul.mubr.bf16.gmra.mrb[0].mxu0 %v692
    %v727 = vpop.f32.mrb[0].mxu0
    %v728 = vadd.f32 0.0, %v727
    %v729 = vpop.f32.mrb[0].mxu0
    %v730 = vadd.f32 0.0, %v729
    %v731 = vpop.f32.mrb[0].mxu0
    %v732 = vpop.f32.mrb[0].mxu0
    %733 = vdwg.mxu0
    %734 = vmatprep.subr.bf16.mxu0 %v185
    %735 = vmatpush1.bf16.msra.mxu0 %v184
    %736 = vmatprep.subr.bf16.mxu0 %v189
    %737 = vmatpush1.bf16.msra.mxu0 %v188
    %738 = vmatprep.subr.bf16.mxu0 %v193
    %739 = vmatpush1.bf16.msra.mxu0 %v192
    %740 = vmatprep.subr.bf16.mxu0 %v197
    %741 = vmatpush1.bf16.msra.mxu0 %v196
    %742 = vmatprep.subr.bf16.mxu0 %v201
    %743 = vmatpush1.bf16.msra.mxu0 %v200
    %744 = vmatprep.subr.bf16.mxu0 %v205
    %745 = vmatpush1.bf16.msra.mxu0 %v204
    %746 = vmatprep.subr.bf16.mxu0 %v209
    %747 = vmatpush1.bf16.msra.mxu0 %v208
    %748 = vmatprep.subr.bf16.mxu0 %v213
    %749 = vmatpush1.bf16.msra.mxu0 %v212
    %750 = vmatprep.subr.bf16.mxu0 0
    %751 = vmatpush1.bf16.msra.mxu0 0
    %752 = vmatprep.subr.bf16.mxu0 0
    %753 = vmatpush1.bf16.msra.mxu0 0
    %754 = vmatprep.subr.bf16.mxu0 0
    %755 = vmatpush1.bf16.msra.mxu0 0
    %756 = vmatprep.subr.bf16.mxu0 0
    %757 = vmatpush1.bf16.msra.mxu0 0
    %758 = vmatprep.subr.bf16.mxu0 0
    %759 = vmatpush1.bf16.msra.mxu0 0
    %760 = vmatprep.subr.bf16.mxu0 0
    %761 = vmatpush1.bf16.msra.mxu0 0
    %762 = vmatprep.subr.bf16.mxu0 0
    %763 = vmatpush1.bf16.msra.mxu0 0
    %764 = vmatprep.subr.bf16.mxu0 0
    %765 = vmatpush1.bf16.msra.mxu0 0
    %766 = vmatprep.mubr.bf16.mxu0 0
    %767 = vmatmul.mubr.bf16.gmra.mrb[0].mxu0 %v692
    %v768 = vpop.f32.mrb[0].mxu0
    %v769 = vadd.f32 0.0, %v768
    %v770 = vpop.f32.mrb[0].mxu0
    %v771 = vadd.f32 0.0, %v770
    %v772 = vpop.f32.mrb[0].mxu0
    %v773 = vpop.f32.mrb[0].mxu0
    %774 = vdwg.mxu0
    %v775 = vadd.f32 %v688, %v728
    %v776 = vadd.f32 %v689, %v730
    %v777 = vadd.f32 %v690, %v769
    %v778 = vadd.f32 %v691, %v771
    %v779 = vmul.f32 %v775, 0.5
    %v780 = vmul.f32 %v776, 0.5
    %v781 = vmul.f32 %v777, 0.5
    %v782 = vtanh.pop %v779
    %v783 = vtanh.pop %v780
    %v784 = vtanh.pop %v781
    %v785 = vmul.f32 %v782, 0.5
    %v786 = vmul.f32 %v783, 0.5
    %v787 = vmul.f32 %v784, 0.5
    %v788 = vadd.f32 %v785, 0.5
    %v789 = vadd.f32 %v786, 0.5
    %v790 = vadd.f32 %v787, 0.5
    %v791 = vtanh.pop %v778
    %v792 = vmul.f32 %v789, %v682
    %v793 = vmul.f32 %v788, %v791
    %v794 = vadd.f32 %v792, %v793
    %v795 = vtanh.pop %v794
    %v796 = vmul.f32 %v790, %v795
    %s797 = scalar_lea.vmem [#allocation9], 32
    %798 = vst [vmem:[%s797] sm:$0xff] %v796
    %s799 = scalar_lea.vmem [#allocation4], 160
    %v800 = vld [vmem:[%s799] sm:$0xff]
    %v801 = vld [vmem:[%s799 + $0x8] sm:$0xff]
    %v802 = vld [vmem:[%s799 + $0x10] sm:$0xff]
    %v803 = vld [vmem:[%s799 + $0x18] sm:$0xff]
    %v804 = vpack.c.bf16 %v796, %v796
    %805 = vmatprep.subr.bf16.mxu0 %v183
    %806 = vmatpush1.bf16.msra.mxu0 %v182
    %807 = vmatprep.subr.bf16.mxu0 %v187
    %808 = vmatpush1.bf16.msra.mxu0 %v186
    %809 = vmatprep.subr.bf16.mxu0 %v191
    %810 = vmatpush1.bf16.msra.mxu0 %v190
    %811 = vmatprep.subr.bf16.mxu0 %v195
    %812 = vmatpush1.bf16.msra.mxu0 %v194
    %813 = vmatprep.subr.bf16.mxu0 %v199
    %814 = vmatpush1.bf16.msra.mxu0 %v198
    %815 = vmatprep.subr.bf16.mxu0 %v203
    %816 = vmatpush1.bf16.msra.mxu0 %v202
    %817 = vmatprep.subr.bf16.mxu0 %v207
    %818 = vmatpush1.bf16.msra.mxu0 %v206
    %819 = vmatprep.subr.bf16.mxu0 %v211
    %820 = vmatpush1.bf16.msra.mxu0 %v210
    %821 = vmatprep.subr.bf16.mxu0 0
    %822 = vmatpush1.bf16.msra.mxu0 0
    %823 = vmatprep.subr.bf16.mxu0 0
    %824 = vmatpush1.bf16.msra.mxu0 0
    %825 = vmatprep.subr.bf16.mxu0 0
    %826 = vmatpush1.bf16.msra.mxu0 0
    %827 = vmatprep.subr.bf16.mxu0 0
    %828 = vmatpush1.bf16.msra.mxu0 0
    %829 = vmatprep.subr.bf16.mxu0 0
    %830 = vmatpush1.bf16.msra.mxu0 0
    %831 = vmatprep.subr.bf16.mxu0 0
    %832 = vmatpush1.bf16.msra.mxu0 0
    %833 = vmatprep.subr.bf16.mxu0 0
    %834 = vmatpush1.bf16.msra.mxu0 0
    %835 = vmatprep.subr.bf16.mxu0 0
    %836 = vmatpush1.bf16.msra.mxu0 0
    %837 = vmatprep.mubr.bf16.mxu0 0
    %838 = vmatmul.mubr.bf16.gmra.mrb[0].mxu0 %v804
    %v839 = vpop.f32.mrb[0].mxu0
    %v840 = vadd.f32 0.0, %v839
    %v841 = vpop.f32.mrb[0].mxu0
    %v842 = vadd.f32 0.0, %v841
    %v843 = vpop.f32.mrb[0].mxu0
    %v844 = vpop.f32.mrb[0].mxu0
    %845 = vdwg.mxu0
    %846 = vmatprep.subr.bf16.mxu0 %v185
    %847 = vmatpush1.bf16.msra.mxu0 %v184
    %848 = vmatprep.subr.bf16.mxu0 %v189
    %849 = vmatpush1.bf16.msra.mxu0 %v188
    %850 = vmatprep.subr.bf16.mxu0 %v193
    %851 = vmatpush1.bf16.msra.mxu0 %v192
    %852 = vmatprep.subr.bf16.mxu0 %v197
    %853 = vmatpush1.bf16.msra.mxu0 %v196
    %854 = vmatprep.subr.bf16.mxu0 %v201
    %855 = vmatpush1.bf16.msra.mxu0 %v200
    %856 = vmatprep.subr.bf16.mxu0 %v205
    %857 = vmatpush1.bf16.msra.mxu0 %v204
    %858 = vmatprep.subr.bf16.mxu0 %v209
    %859 = vmatpush1.bf16.msra.mxu0 %v208
    %860 = vmatprep.subr.bf16.mxu0 %v213
    %861 = vmatpush1.bf16.msra.mxu0 %v212
    %862 = vmatprep.subr.bf16.mxu0 0
    %863 = vmatpush1.bf16.msra.mxu0 0
    %864 = vmatprep.subr.bf16.mxu0 0
    %865 = vmatpush1.bf16.msra.mxu0 0
    %866 = vmatprep.subr.bf16.mxu0 0
    %867 = vmatpush1.bf16.msra.mxu0 0
    %868 = vmatprep.subr.bf16.mxu0 0
    %869 = vmatpush1.bf16.msra.mxu0 0
    %870 = vmatprep.subr.bf16.mxu0 0
    %871 = vmatpush1.bf16.msra.mxu0 0
    %872 = vmatprep.subr.bf16.mxu0 0
    %873 = vmatpush1.bf16.msra.mxu0 0
    %874 = vmatprep.subr.bf16.mxu0 0
    %875 = vmatpush1.bf16.msra.mxu0 0
    %876 = vmatprep.subr.bf16.mxu0 0
    %877 = vmatpush1.bf16.msra.mxu0 0
    %878 = vmatprep.mubr.bf16.mxu0 0
    %879 = vmatmul.mubr.bf16.gmra.mrb[0].mxu0 %v804
    %v880 = vpop.f32.mrb[0].mxu0
    %v881 = vadd.f32 0.0, %v880
    %v882 = vpop.f32.mrb[0].mxu0
    %v883 = vadd.f32 0.0, %v882
    %v884 = vpop.f32.mrb[0].mxu0
    %v885 = vpop.f32.mrb[0].mxu0
    %886 = vdwg.mxu0
    %v887 = vadd.f32 %v800, %v840
    %v888 = vadd.f32 %v801, %v842
    %v889 = vadd.f32 %v802, %v881
    %v890 = vadd.f32 %v803, %v883
    %v891 = vmul.f32 %v887, 0.5
    %v892 = vmul.f32 %v888, 0.5
    %v893 = vmul.f32 %v889, 0.5
    %v894 = vtanh.pop %v891
    %v895 = vtanh.pop %v892
    %v896 = vtanh.pop %v893
    %v897 = vmul.f32 %v894, 0.5
    %v898 = vmul.f32 %v895, 0.5
    %v899 = vmul.f32 %v896, 0.5
    %v900 = vadd.f32 %v897, 0.5
    %v901 = vadd.f32 %v898, 0.5
    %v902 = vadd.f32 %v899, 0.5
    %v903 = vtanh.pop %v890
    %v904 = vmul.f32 %v901, %v794
    %v905 = vmul.f32 %v900, %v903
    %v906 = vadd.f32 %v904, %v905
    %v907 = vtanh.pop %v906
    %v908 = vmul.f32 %v902, %v907
    %s909 = scalar_lea.vmem [#allocation9], 40
    %910 = vst [vmem:[%s909] sm:$0xff] %v908
    %s911 = scalar_lea.vmem [#allocation4], 192
    %v912 = vld [vmem:[%s911] sm:$0xff]
    %v913 = vld [vmem:[%s911 + $0x8] sm:$0xff]
    %v914 = vld [vmem:[%s911 + $0x10] sm:$0xff]
    %v915 = vld [vmem:[%s911 + $0x18] sm:$0xff]
    %v916 = vpack.c.bf16 %v908, %v908
    %917 = vmatprep.subr.bf16.mxu0 %v183
    %918 = vmatpush1.bf16.msra.mxu0 %v182
    %919 = vmatprep.subr.bf16.mxu0 %v187
    %920 = vmatpush1.bf16.msra.mxu0 %v186
    %921 = vmatprep.subr.bf16.mxu0 %v191
    %922 = vmatpush1.bf16.msra.mxu0 %v190
    %923 = vmatprep.subr.bf16.mxu0 %v195
    %924 = vmatpush1.bf16.msra.mxu0 %v194
    %925 = vmatprep.subr.bf16.mxu0 %v199
    %926 = vmatpush1.bf16.msra.mxu0 %v198
    %927 = vmatprep.subr.bf16.mxu0 %v203
    %928 = vmatpush1.bf16.msra.mxu0 %v202
    %929 = vmatprep.subr.bf16.mxu0 %v207
    %930 = vmatpush1.bf16.msra.mxu0 %v206
    %931 = vmatprep.subr.bf16.mxu0 %v211
    %932 = vmatpush1.bf16.msra.mxu0 %v210
    %933 = vmatprep.subr.bf16.mxu0 0
    %934 = vmatpush1.bf16.msra.mxu0 0
    %935 = vmatprep.subr.bf16.mxu0 0
    %936 = vmatpush1.bf16.msra.mxu0 0
    %937 = vmatprep.subr.bf16.mxu0 0
    %938 = vmatpush1.bf16.msra.mxu0 0
    %939 = vmatprep.subr.bf16.mxu0 0
    %940 = vmatpush1.bf16.msra.mxu0 0
    %941 = vmatprep.subr.bf16.mxu0 0
    %942 = vmatpush1.bf16.msra.mxu0 0
    %943 = vmatprep.subr.bf16.mxu0 0
    %944 = vmatpush1.bf16.msra.mxu0 0
    %945 = vmatprep.subr.bf16.mxu0 0
    %946 = vmatpush1.bf16.msra.mxu0 0
    %947 = vmatprep.subr.bf16.mxu0 0
    %948 = vmatpush1.bf16.msra.mxu0 0
    %949 = vmatprep.mubr.bf16.mxu0 0
    %950 = vmatmul.mubr.bf16.gmra.mrb[0].mxu0 %v916
    %v951 = vpop.f32.mrb[0].mxu0
    %v952 = vadd.f32 0.0, %v951
    %v953 = vpop.f32.mrb[0].mxu0
    %v954 = vadd.f32 0.0, %v953
    %v955 = vpop.f32.mrb[0].mxu0
    %v956 = vpop.f32.mrb[0].mxu0
    %957 = vdwg.mxu0
    %958 = vmatprep.subr.bf16.mxu0 %v185
    %959 = vmatpush1.bf16.msra.mxu0 %v184
    %960 = vmatprep.subr.bf16.mxu0 %v189
    %961 = vmatpush1.bf16.msra.mxu0 %v188
    %962 = vmatprep.subr.bf16.mxu0 %v193
    %963 = vmatpush1.bf16.msra.mxu0 %v192
    %964 = vmatprep.subr.bf16.mxu0 %v197
    %965 = vmatpush1.bf16.msra.mxu0 %v196
    %966 = vmatprep.subr.bf16.mxu0 %v201
    %967 = vmatpush1.bf16.msra.mxu0 %v200
    %968 = vmatprep.subr.bf16.mxu0 %v205
    %969 = vmatpush1.bf16.msra.mxu0 %v204
    %970 = vmatprep.subr.bf16.mxu0 %v209
    %971 = vmatpush1.bf16.msra.mxu0 %v208
    %972 = vmatprep.subr.bf16.mxu0 %v213
    %973 = vmatpush1.bf16.msra.mxu0 %v212
    %974 = vmatprep.subr.bf16.mxu0 0
    %975 = vmatpush1.bf16.msra.mxu0 0
    %976 = vmatprep.subr.bf16.mxu0 0
    %977 = vmatpush1.bf16.msra.mxu0 0
    %978 = vmatprep.subr.bf16.mxu0 0
    %979 = vmatpush1.bf16.msra.mxu0 0
    %980 = vmatprep.subr.bf16.mxu0 0
    %981 = vmatpush1.bf16.msra.mxu0 0
    %982 = vmatprep.subr.bf16.mxu0 0
    %983 = vmatpush1.bf16.msra.mxu0 0
    %984 = vmatprep.subr.bf16.mxu0 0
    %985 = vmatpush1.bf16.msra.mxu0 0
    %986 = vmatprep.subr.bf16.mxu0 0
    %987 = vmatpush1.bf16.msra.mxu0 0
    %988 = vmatprep.subr.bf16.mxu0 0
    %989 = vmatpush1.bf16.msra.mxu0 0
    %990 = vmatprep.mubr.bf16.mxu0 0
    %991 = vmatmul.mubr.bf16.gmra.mrb[0].mxu0 %v916
    %v992 = vpop.f32.mrb[0].mxu0
    %v993 = vadd.f32 0.0, %v992
    %v994 = vpop.f32.mrb[0].mxu0
    %v995 = vadd.f32 0.0, %v994
    %v996 = vpop.f32.mrb[0].mxu0
    %v997 = vpop.f32.mrb[0].mxu0
    %998 = vdwg.mxu0
    %v999 = vadd.f32 %v912, %v952
    %v1000 = vadd.f32 %v913, %v954
    %v1001 = vadd.f32 %v914, %v993
    %v1002 = vadd.f32 %v915, %v995
    %v1003 = vmul.f32 %v999, 0.5
    %v1004 = vmul.f32 %v1000, 0.5
    %v1005 = vmul.f32 %v1001, 0.5
    %v1006 = vtanh.pop %v1003
    %v1007 = vtanh.pop %v1004
    %v1008 = vtanh.pop %v1005
    %v1009 = vmul.f32 %v1006, 0.5
    %v1010 = vmul.f32 %v1007, 0.5
    %v1011 = vmul.f32 %v1008, 0.5
    %v1012 = vadd.f32 %v1009, 0.5
    %v1013 = vadd.f32 %v1010, 0.5
    %v1014 = vadd.f32 %v1011, 0.5
    %v1015 = vtanh.pop %v1002
    %v1016 = vmul.f32 %v1013, %v906
    %v1017 = vmul.f32 %v1012, %v1015
    %v1018 = vadd.f32 %v1016, %v1017
    %v1019 = vtanh.pop %v1018
    %v1020 = vmul.f32 %v1014, %v1019
    %s1021 = scalar_lea.vmem [#allocation9], 48
    %1022 = vst [vmem:[%s1021] sm:$0xff] %v1020
    %s1023 = scalar_lea.vmem [#allocation4], 224
    %v1024 = vld [vmem:[%s1023] sm:$0xff]
    %v1025 = vld [vmem:[%s1023 + $0x8] sm:$0xff]
    %v1026 = vld [vmem:[%s1023 + $0x10] sm:$0xff]
    %v1027 = vld [vmem:[%s1023 + $0x18] sm:$0xff]
    %v1028 = vpack.c.bf16 %v1020, %v1020
    %1029 = vmatprep.subr.bf16.mxu0 %v183
    %1030 = vmatpush1.bf16.msra.mxu0 %v182
    %1031 = vmatprep.subr.bf16.mxu0 %v187
    %1032 = vmatpush1.bf16.msra.mxu0 %v186
    %1033 = vmatprep.subr.bf16.mxu0 %v191
    %1034 = vmatpush1.bf16.msra.mxu0 %v190
    %1035 = vmatprep.subr.bf16.mxu0 %v195
    %1036 = vmatpush1.bf16.msra.mxu0 %v194
    %1037 = vmatprep.subr.bf16.mxu0 %v199
    %1038 = vmatpush1.bf16.msra.mxu0 %v198
    %1039 = vmatprep.subr.bf16.mxu0 %v203
    %1040 = vmatpush1.bf16.msra.mxu0 %v202
    %1041 = vmatprep.subr.bf16.mxu0 %v207
    %1042 = vmatpush1.bf16.msra.mxu0 %v206
    %1043 = vmatprep.subr.bf16.mxu0 %v211
    %1044 = vmatpush1.bf16.msra.mxu0 %v210
    %1045 = vmatprep.subr.bf16.mxu0 0
    %1046 = vmatpush1.bf16.msra.mxu0 0
    %1047 = vmatprep.subr.bf16.mxu0 0
    %1048 = vmatpush1.bf16.msra.mxu0 0
    %1049 = vmatprep.subr.bf16.mxu0 0
    %1050 = vmatpush1.bf16.msra.mxu0 0
    %1051 = vmatprep.subr.bf16.mxu0 0
    %1052 = vmatpush1.bf16.msra.mxu0 0
    %1053 = vmatprep.subr.bf16.mxu0 0
    %1054 = vmatpush1.bf16.msra.mxu0 0
    %1055 = vmatprep.subr.bf16.mxu0 0
    %1056 = vmatpush1.bf16.msra.mxu0 0
    %1057 = vmatprep.subr.bf16.mxu0 0
    %1058 = vmatpush1.bf16.msra.mxu0 0
    %1059 = vmatprep.subr.bf16.mxu0 0
    %1060 = vmatpush1.bf16.msra.mxu0 0
    %1061 = vmatprep.mubr.bf16.mxu0 0
    %1062 = vmatmul.mubr.bf16.gmra.mrb[0].mxu0 %v1028
    %v1063 = vpop.f32.mrb[0].mxu0
    %v1064 = vadd.f32 0.0, %v1063
    %v1065 = vpop.f32.mrb[0].mxu0
    %v1066 = vadd.f32 0.0, %v1065
    %v1067 = vpop.f32.mrb[0].mxu0
    %v1068 = vpop.f32.mrb[0].mxu0
    %1069 = vdwg.mxu0
    %1070 = vmatprep.subr.bf16.mxu0 %v185
    %1071 = vmatpush1.bf16.msra.mxu0 %v184
    %1072 = vmatprep.subr.bf16.mxu0 %v189
    %1073 = vmatpush1.bf16.msra.mxu0 %v188
    %1074 = vmatprep.subr.bf16.mxu0 %v193
    %1075 = vmatpush1.bf16.msra.mxu0 %v192
    %1076 = vmatprep.subr.bf16.mxu0 %v197
    %1077 = vmatpush1.bf16.msra.mxu0 %v196
    %1078 = vmatprep.subr.bf16.mxu0 %v201
    %1079 = vmatpush1.bf16.msra.mxu0 %v200
    %1080 = vmatprep.subr.bf16.mxu0 %v205
    %1081 = vmatpush1.bf16.msra.mxu0 %v204
    %1082 = vmatprep.subr.bf16.mxu0 %v209
    %1083 = vmatpush1.bf16.msra.mxu0 %v208
    %1084 = vmatprep.subr.bf16.mxu0 %v213
    %1085 = vmatpush1.bf16.msra.mxu0 %v212
    %1086 = vmatprep.subr.bf16.mxu0 0
    %1087 = vmatpush1.bf16.msra.mxu0 0
    %1088 = vmatprep.subr.bf16.mxu0 0
    %1089 = vmatpush1.bf16.msra.mxu0 0
    %1090 = vmatprep.subr.bf16.mxu0 0
    %1091 = vmatpush1.bf16.msra.mxu0 0
    %1092 = vmatprep.subr.bf16.mxu0 0
    %1093 = vmatpush1.bf16.msra.mxu0 0
    %1094 = vmatprep.subr.bf16.mxu0 0
    %1095 = vmatpush1.bf16.msra.mxu0 0
    %1096 = vmatprep.subr.bf16.mxu0 0
    %1097 = vmatpush1.bf16.msra.mxu0 0
    %1098 = vmatprep.subr.bf16.mxu0 0
    %1099 = vmatpush1.bf16.msra.mxu0 0
    %1100 = vmatprep.subr.bf16.mxu0 0
    %1101 = vmatpush1.bf16.msra.mxu0 0
    %1102 = vmatprep.mubr.bf16.mxu0 0
    %1103 = vmatmul.mubr.bf16.gmra.mrb[0].mxu0 %v1028
    %v1104 = vpop.f32.mrb[0].mxu0
    %v1105 = vadd.f32 0.0, %v1104
    %v1106 = vpop.f32.mrb[0].mxu0
    %v1107 = vadd.f32 0.0, %v1106
    %v1108 = vpop.f32.mrb[0].mxu0
    %v1109 = vpop.f32.mrb[0].mxu0
    %1110 = vdwg.mxu0
    %v1111 = vadd.f32 %v1024, %v1064
    %v1112 = vadd.f32 %v1025, %v1066
    %v1113 = vadd.f32 %v1026, %v1105
    %v1114 = vadd.f32 %v1027, %v1107
    %v1115 = vmul.f32 %v1111, 0.5
    %v1116 = vmul.f32 %v1112, 0.5
    %v1117 = vmul.f32 %v1113, 0.5
    %v1118 = vtanh.pop %v1115
    %v1119 = vtanh.pop %v1116
    %v1120 = vtanh.pop %v1117
    %v1121 = vmul.f32 %v1118, 0.5
    %v1122 = vmul.f32 %v1119, 0.5
    %v1123 = vmul.f32 %v1120, 0.5
    %v1124 = vadd.f32 %v1121, 0.5
    %v1125 = vadd.f32 %v1122, 0.5
    %v1126 = vadd.f32 %v1123, 0.5
    %v1127 = vtanh.pop %v1114
    %v1128 = vmul.f32 %v1125, %v1018
    %v1129 = vmul.f32 %v1124, %v1127
    %v1130 = vadd.f32 %v1128, %v1129
    %v1131 = vtanh.pop %v1130
    %v1132 = vmul.f32 %v1126, %v1131
    %s1133 = scalar_lea.vmem [#allocation9], 56
    %1134 = vst [vmem:[%s1133] sm:$0xff] %v1132
    %1135 = vst [vmem:[#allocation2] sm:$0xff] %v1132
    %1136 = vst [vmem:[#allocation3] sm:$0xff] %v1130
    // Predicated region
    $region22: #{tpu_custom_call.1} parent=1 // pred_check
      _
    $region23: #{tpu_custom_call.1} parent=1 // pred_check_branch
      %1138 = sbr.rel (0) target = $region25
    $region24: #{tpu_custom_call.1} parent=1 // pred_region
      %s1140 = ssub.s32 1024, 1024
      %1141 = vsyncadd [#allocation6], %s1140
      %s1142 = sshll.u32 [#allocation9], 4
      %s1143 = int_to_ptr.vmem [resolvable:$true] %s1142
      %1148 = dma.vmem_to_hbm [thread:$0]  %s1143, 1024, %s2, [#allocation6], 128, 128, 8
    $region25: #{tpu_custom_call.1} parent=1 // pred_fallthru
      _
    // Predicated region
    $region26: #{tpu_custom_call.1} parent=1 // pred_check
      _
    $region27: #{tpu_custom_call.1} parent=1 // pred_check_branch
      %1150 = sbr.rel (0) target = $region29
    $region28: #{tpu_custom_call.1} parent=1 // pred_region
      %1151 = dma.done [#allocation6], 1024
    $region29: #{tpu_custom_call.1} parent=1 // pred_fallthru
      _
    %1152 = vsyncpa [#allocation5], 1
    %1153 = vsyncpa [#allocation8], 1
    %1154 = vsyncpa [#allocation6], 1

</llo_original>
